<compile_context>
chip_gen: v5e
topology: v5e:2x2
jax: 0.10.0
libtpu: 0.0.40
codegen_flags: <defaults>
</compile_context>

<pallas_src>
import functools

import jax
import jax.numpy as jnp
from jax.experimental import pallas as pl
from jax.experimental.pallas import tpu as pltpu


def _full_spec(shape):
    zeros = (0,) * len(shape)
    return pl.BlockSpec(shape, lambda i: zeros)


def _layernorm(x, g, b):
    mu = jnp.mean(x, axis=-1, keepdims=True)
    var = jnp.mean((x - mu) ** 2, axis=-1, keepdims=True)
    return (x - mu) * jax.lax.rsqrt(var + 1e-12) * g + b


# ----------------------------------------------------------------------------
# Kernel 1: batch-flattened encoder layer + pooler + type head
#   All matmuls operate on (B*S, ...) rows (single grid step), bf16 operands,
#   f32 accumulation; LayerNorm / softmax statistics stay in f32.
# ----------------------------------------------------------------------------
def encoder_kernel(x_ref, bias_ref, clssel_ref,
                   wqkv_ref, bqkv_ref, wo_ref, bo_ref, g1_ref, b1_ref,
                   wf1_ref, bf1_ref, wf2_ref, bf2_ref, g2_ref, b2_ref,
                   wp_ref, bp_ref, wt1_ref, wt2_ref, btype_ref, lab_ref,
                   hid_ref, cls_ref, pool_ref, ptj_ref, dtp_ref):
    f32 = jnp.float32
    bf16 = jnp.bfloat16
    H = x_ref.shape[-1]
    scale = 1.0 / float(H) ** 0.5

    x = x_ref[...]                                                     # (B*S, H) f32
    qkv = jnp.dot(x.astype(bf16), wqkv_ref[...],
                  preferred_element_type=f32) + bqkv_ref[...]
    q, k, v = qkv[:, :H], qkv[:, H:2 * H], qkv[:, 2 * H:]
    scores = jax.lax.dot_general(q.astype(bf16), k.astype(bf16),
                                 (((1,), (1,)), ((), ())),
                                 preferred_element_type=f32) * scale
    # bias_ref is the hoisted block-diagonal + key-padding mask (wrapper-built)
    attn = jax.nn.softmax(scores + bias_ref[...], axis=-1)
    ctx = jnp.dot(attn.astype(bf16), v.astype(bf16), preferred_element_type=f32)
    ao = jnp.dot(ctx.astype(bf16), wo_ref[...], preferred_element_type=f32) + bo_ref[...]
    h1 = _layernorm(x + ao, g1_ref[...], b1_ref[...])
    ff = jax.nn.gelu(jnp.dot(h1.astype(bf16), wf1_ref[...],
                             preferred_element_type=f32) + bf1_ref[...],
                     approximate=True)
    ff = jnp.dot(ff.astype(bf16), wf2_ref[...], preferred_element_type=f32) + bf2_ref[...]
    h2 = _layernorm(h1 + ff, g2_ref[...], b2_ref[...])                 # (B*S, H) f32
    hid_ref[...] = h2

    # [CLS] rows via exact f32 one-hot selection, then batched pooler over B rows
    e_cls = jnp.dot(clssel_ref[...], h2, preferred_element_type=f32)   # (B, H)
    cls_ref[...] = e_cls
    pool_ref[...] = jnp.tanh(jnp.dot(e_cls.astype(bf16), wp_ref[...],
                                     preferred_element_type=f32) + bp_ref[...])

    # type_ffn(concat([label_emb, e_cls])) split into two matmuls
    lab = lab_ref[...]                                                 # (C, H)
    lab_row = jax.lax.dot_general(wt1_ref[...], lab.astype(bf16),
                                  (((0,), (1,)), ((), ())),
                                  preferred_element_type=f32)          # (1, C)
    cls_logit = jnp.dot(e_cls.astype(bf16), wt2_ref[...],
                        preferred_element_type=f32)                    # (B, 1)
    p_tj = jax.nn.sigmoid(cls_logit + lab_row + btype_ref[...])        # (B, C)
    ptj_ref[...] = p_tj
    dtp_ref[...] = jax.nn.softmax(p_tj, axis=-1)


def run_encoder(x2, attn_bias, cls_sel, p):
    BS, H = x2.shape
    B = cls_sel.shape[0]
    C = p["label_emb"].shape[0]
    weights = [p["wqkv"], p["bqkv"], p["wo"], p["bo"], p["ln1_g"], p["ln1_b"],
               p["wf1"], p["bf1"], p["wf2"], p["bf2"], p["ln2_g"], p["ln2_b"],
               p["wpool"], p["bpool"], p["w_type1"], p["w_type2"],
               p["b_type"], p["label_emb"]]
    args = [x2, attn_bias, cls_sel] + weights
    out_shape = (jax.ShapeDtypeStruct((BS, H), jnp.float32),      # hidden (flat)
                 jax.ShapeDtypeStruct((B, H), jnp.float32),       # e_cls
                 jax.ShapeDtypeStruct((B, H), jnp.float32),       # pooled
                 jax.ShapeDtypeStruct((B, C), jnp.float32),       # p_tj
                 jax.ShapeDtypeStruct((B, C), jnp.float32))       # D_T_P
    return pl.pallas_call(
        encoder_kernel,
        grid=(1,),
        in_specs=[_full_spec(a.shape) for a in args],
        out_specs=tuple(_full_spec(s.shape) for s in out_shape),
        out_shape=out_shape,
        compiler_params=pltpu.CompilerParams(dimension_semantics=("arbitrary",)),
    )(*args)


# ----------------------------------------------------------------------------
# Kernel 2: span gather (one-hot matmul), trigger/fc head on gathered spans,
#           D_W_P, cosine cost + entropic Sinkhorn (VPU/EUP-only serial loop).
# ----------------------------------------------------------------------------
def heads_kernel(hid_ref, onehot_ref, dtp_ref, whead_ref, bh_ref, lnorm_ref,
                 trig_ref, head_ref, pwi_ref, dwp_ref, cost_ref, pi_ref,
                 *, n_iters, reg):
    f32 = jnp.float32
    bf16 = jnp.bfloat16
    B, W, S = onehot_ref.shape
    Cp1 = whead_ref.shape[-1]

    # span gather: (start one-hot + end one-hot) @ hidden -> x[start] + x[end]
    trig = jnp.einsum('bws,bsh->bwh', onehot_ref[...], hid_ref[...],
                      preferred_element_type=f32)                      # (B, W, H)
    trig_ref[...] = trig

    # fused [trigger_ffn | fc] head applied ONLY to gathered span features
    head = (jnp.einsum('bwh,bhk->bwk', trig.astype(bf16), whead_ref[...],
                       preferred_element_type=f32) + bh_ref[...])      # (B, W, 1+C)
    head_ref[...] = head

    # trigger logit = lane 0 of the fused head (mask + lane-reduce, no slicing)
    lane0 = (jax.lax.broadcasted_iota(jnp.int32, (B, W, Cp1), 2) == 0).astype(f32)
    p_wi = jax.nn.sigmoid(jnp.sum(head * lane0, axis=2, keepdims=True))  # (B, W, 1)
    pwi_ref[...] = p_wi
    dwp = jax.nn.softmax(p_wi, axis=1)                                   # over spans
    dwp_ref[...] = dwp

    # cosine cost: 1 - (trig . lnorm) / ||trig||   (lnorm prebuilt in wrapper)
    dots = jnp.einsum('bwh,bch->bwc', trig, lnorm_ref[...],
                      preferred_element_type=f32)                        # (B, W, C)
    inv_n = jax.lax.rsqrt(jnp.sum(trig * trig, axis=-1, keepdims=True) + 1e-12)
    cost = 1.0 - dots * inv_n
    cost_ref[...] = cost

    # entropic Sinkhorn — kept entirely on VPU/EUP (no MXU in the serial loop)
    a = dwp                                                              # (B, W, 1)
    bm = dtp_ref[...]                                                    # (B, 1, C)
    K = jnp.exp(cost * (-1.0 / reg))
    C = bm.shape[-1]
    u0 = jnp.full((B, W, 1), 1.0 / W, f32)
    v0 = jnp.full((B, 1, C), 1.0 / C, f32)

    def body(_, carry):
        u, v = carry
        Kv = jnp.sum(K * v, axis=2, keepdims=True)                       # (B, W, 1)
        u = a * pl.reciprocal(Kv + 1e-9, approx=True)
        uK = jnp.sum(K * u, axis=1, keepdims=True)                       # (B, 1, C)
        v = bm * pl.reciprocal(uK + 1e-9, approx=True)
        return (u, v)

    u, v = jax.lax.fori_loop(0, n_iters, body, (u0, v0), unroll=True)
    pi_ref[...] = u * K * v                                              # (B, W, C)


def run_heads(hidden3, onehot3, dtp3, whead_b, b_head3, lnorm_b,
              *, n_iters=50, reg=0.1):
    B, S, H = hidden3.shape
    W = onehot3.shape[1]
    C = lnorm_b.shape[1]
    args = [hidden3, onehot3, dtp3, whead_b, b_head3, lnorm_b]
    out_shape = (jax.ShapeDtypeStruct((B, W, H), jnp.float32),       # trig features
                 jax.ShapeDtypeStruct((B, W, 1 + C), jnp.float32),   # fused head
                 jax.ShapeDtypeStruct((B, W, 1), jnp.float32),       # p_wi
                 jax.ShapeDtypeStruct((B, W, 1), jnp.float32),       # D_W_P
                 jax.ShapeDtypeStruct((B, W, C), jnp.float32),       # cost matrix
                 jax.ShapeDtypeStruct((B, W, C), jnp.float32))       # pi_star
    return pl.pallas_call(
        functools.partial(heads_kernel, n_iters=n_iters, reg=reg),
        grid=(1,),
        in_specs=[_full_spec(a.shape) for a in args],
        out_specs=tuple(_full_spec(s.shape) for s in out_shape),
        out_shape=out_shape,
        compiler_params=pltpu.CompilerParams(dimension_semantics=("arbitrary",)),
    )(*args)


# ----------------------------------------------------------------------------
# BertED forward (glue in plain JAX, hot paths in the two fused kernels above)
# ----------------------------------------------------------------------------
def bert_ed_forward(params, token_ids, masks, spans):
    B, S = token_ids.shape
    H = params["word_emb"].shape[1]
    C = params["label_emb"].shape[0]
    W = spans.shape[1]
    BS = B * S

    # embedding lookup (glue); batch folded into matmul rows for the encoder
    emb = jnp.take(params["word_emb"], token_ids, axis=0) + params["pos_emb"][None, :, :]
    x2 = emb.reshape(BS, H).astype(jnp.float32)

    # hoisted attention bias: block-diagonal (per example) + key-padding mask
    ids = jnp.arange(BS)
    same_ex = (ids[:, None] // S) == (ids[None, :] // S)
    key_ok = (masks.reshape(BS) == 1)[None, :]
    attn_bias = jnp.where(same_ex & key_ok, 0.0, -1e9).astype(jnp.float32)

    # exact [CLS]-row selector (one-hot; f32 so the selection matmul is exact)
    cls_sel = jnp.zeros((B, BS), jnp.float32).at[jnp.arange(B), jnp.arange(B) * S].set(1.0)

    hidden2, e_cls, pooled, p_tj, D_T_P = run_encoder(x2, attn_bias, cls_sel, params)

    hidden = hidden2.reshape(B, S, H)

    # hoisted span-gather matrix: start one-hot + end one-hot (OOB -> zero row)
    onehot = (jax.nn.one_hot(spans[:, :, 0], S, dtype=jnp.float32)
              + jax.nn.one_hot(spans[:, :, 1], S, dtype=jnp.float32))   # (B, W, S)

    # fuse trigger_ffn + fc into one head: [w_trig | w_fc] -> (H, 1+C),
    # broadcast over the tiny batch for the batched span-head einsum
    w_head = jnp.concatenate([params["w_trig"], params["w_fc"]], axis=1)
    w_head_b = jnp.broadcast_to(w_head[None], (B, H, 1 + C))
    b_head3 = jnp.concatenate([params["b_trig"], params["b_fc"]],
                              axis=1).reshape(1, 1, 1 + C)

    # normalized label embeddings for the cosine cost (computed once)
    lab = params["label_emb"]
    lnorm = lab * jax.lax.rsqrt(jnp.sum(lab * lab, axis=-1, keepdims=True) + 1e-12)
    lnorm_b = jnp.broadcast_to(lnorm[None], (B, C, H)).astype(jnp.float32)

    trig3, head3, pwi3, dwp3, cost, pi_star = run_heads(
        hidden, onehot, D_T_P.reshape(B, 1, C), w_head_b, b_head3, lnorm_b,
        n_iters=50, reg=0.1)

    return {
        "reps": e_cls,                                   # x[:, 0, :]
        "outputs": head3[:, :, 1:].reshape(B * W, C),    # fc(trig_feature)
        "context_feat": hidden2,                         # x.view(-1, H)
        "trig_feat": trig3.reshape(B * W, H),            # torch.cat(trig_feature)
        "pooled_feat": pooled,
        "last_hidden_state_order": trig3,                # per-example trigger feats
        "p_wi_order": pwi3[:, :, 0],
        "D_W_P_order": dwp3[:, :, 0],
        "p_tj": p_tj,
        "D_T_P": D_T_P,
        "pi_star": pi_star,
        "cost_matrix": cost,
    }


# ----------------------------------------------------------------------------
# Deterministic parameter init (synthetic, BERT-ish scale 0.02).
# Matmul weights stored in bf16 (MXU-native); biases/LN/label_emb stay f32.
# ----------------------------------------------------------------------------
def init_params(key, *, vocab, seq, hidden, class_num_total):
    ks = iter(jax.random.split(key, 32))
    nrm = lambda shape: 0.02 * jax.random.normal(next(ks), shape, jnp.float32)
    bf = jnp.bfloat16
    H = hidden
    p = {
        "word_emb": nrm((vocab, H)),
        "pos_emb": nrm((seq, H)),
        "wqkv": nrm((H, 3 * H)).astype(bf), "bqkv": jnp.zeros((1, 3 * H), jnp.float32),
        "wo": nrm((H, H)).astype(bf), "bo": jnp.zeros((1, H), jnp.float32),
        "ln1_g": jnp.ones((1, H), jnp.float32), "ln1_b": jnp.zeros((1, H), jnp.float32),
        "wf1": nrm((H, 4 * H)).astype(bf), "bf1": jnp.zeros((1, 4 * H), jnp.float32),
        "wf2": nrm((4 * H, H)).astype(bf), "bf2": jnp.zeros((1, H), jnp.float32),
        "ln2_g": jnp.ones((1, H), jnp.float32), "ln2_b": jnp.zeros((1, H), jnp.float32),
        "wpool": nrm((H, H)).astype(bf), "bpool": jnp.zeros((1, H), jnp.float32),
        "w_fc": nrm((H, class_num_total)).astype(bf),
        "b_fc": jnp.zeros((1, class_num_total), jnp.float32),
        "w_trig": nrm((H, 1)).astype(bf), "b_trig": jnp.zeros((1, 1), jnp.float32),
        "w_type1": nrm((H, 1)).astype(bf), "w_type2": nrm((H, 1)).astype(bf),
        "b_type": jnp.zeros((1, 1), jnp.float32),
        # torch.rand([class_num, hidden])
        "label_emb": jax.random.uniform(next(ks), (class_num_total, H), jnp.float32),
    }
    return p


if __name__ == "__main__":
    B, S, H = 2, 16, 32
    CLASS_NUM_TOTAL = 6        # args.class_num + 1
    W_SPANS = 4
    VOCAB = 50

    key = jax.random.PRNGKey(0)
    k_par, k_ids = jax.random.split(key)
    params = init_params(k_par, vocab=VOCAB, seq=S, hidden=H,
                         class_num_total=CLASS_NUM_TOTAL)

    token_ids = jax.random.randint(k_ids, (B, S), 0, VOCAB, dtype=jnp.int32)
    masks = jnp.array([[1] * 16, [1] * 12 + [0] * 4], dtype=jnp.int32)
    spans = jnp.array([[[1, 2], [3, 4], [5, 6], [7, 8]],
                       [[1, 2], [3, 5], [6, 7], [9, 11]]], dtype=jnp.int32)

    out = bert_ed_forward(params, token_ids, masks, spans)
    out = jax.block_until_ready(out)

    # basic sanity: everything finite, shapes as the module implies
    for k, v in out.items():
        assert bool(jnp.all(jnp.isfinite(v))), f"non-finite values in {k}"
    assert out["outputs"].shape == (B * W_SPANS, CLASS_NUM_TOTAL)
    assert out["pi_star"].shape == (B, W_SPANS, CLASS_NUM_TOTAL)
    assert out["trig_feat"].shape == (B * W_SPANS, H)
    assert out["context_feat"].shape == (B * S, H)

    print("KERNEL_OK")
</pallas_src>

<mosaic_0001>
module attributes {stable_mosaic.version = 11 : i64} {
  func.func @encoder_kernel(%arg0: i32, %arg1: memref<32x32xf32, #tpu.memory_space<vmem>>, %arg2: memref<32x32xf32, #tpu.memory_space<vmem>>, %arg3: memref<2x32xf32, #tpu.memory_space<vmem>>, %arg4: memref<32x96xbf16, #tpu.memory_space<vmem>>, %arg5: memref<1x96xf32, #tpu.memory_space<vmem>>, %arg6: memref<32x32xbf16, #tpu.memory_space<vmem>>, %arg7: memref<1x32xf32, #tpu.memory_space<vmem>>, %arg8: memref<1x32xf32, #tpu.memory_space<vmem>>, %arg9: memref<1x32xf32, #tpu.memory_space<vmem>>, %arg10: memref<32x128xbf16, #tpu.memory_space<vmem>>, %arg11: memref<1x128xf32, #tpu.memory_space<vmem>>, %arg12: memref<128x32xbf16, #tpu.memory_space<vmem>>, %arg13: memref<1x32xf32, #tpu.memory_space<vmem>>, %arg14: memref<1x32xf32, #tpu.memory_space<vmem>>, %arg15: memref<1x32xf32, #tpu.memory_space<vmem>>, %arg16: memref<32x32xbf16, #tpu.memory_space<vmem>>, %arg17: memref<1x32xf32, #tpu.memory_space<vmem>>, %arg18: memref<32x1xbf16, #tpu.memory_space<vmem>>, %arg19: memref<32x1xbf16, #tpu.memory_space<vmem>>, %arg20: memref<1x1xf32, #tpu.memory_space<vmem>>, %arg21: memref<6x32xf32, #tpu.memory_space<vmem>>, %arg22: memref<32x32xf32, #tpu.memory_space<vmem>>, %arg23: memref<2x32xf32, #tpu.memory_space<vmem>>, %arg24: memref<2x32xf32, #tpu.memory_space<vmem>>, %arg25: memref<2x6xf32, #tpu.memory_space<vmem>>, %arg26: memref<2x6xf32, #tpu.memory_space<vmem>>) attributes {dimension_semantics = [#tpu.dimension_semantics<arbitrary>], iteration_bounds = array<i64: 1>, scalar_prefetch = 0 : i64, scratch_operands = 0 : i64, tpu.core_type = #tpu.core_type<tc>, window_params = [{pipeline_mode = #tpu.pipeline_mode<synchronous>, transform_indices = @transform_0, window_bounds = array<i64: 32, 32>}, {pipeline_mode = #tpu.pipeline_mode<synchronous>, transform_indices = @transform_1, window_bounds = array<i64: 32, 32>}, {pipeline_mode = #tpu.pipeline_mode<synchronous>, transform_indices = @transform_2, window_bounds = array<i64: 2, 32>}, {pipeline_mode = #tpu.pipeline_mode<synchronous>, transform_indices = @transform_3, window_bounds = array<i64: 32, 96>}, {pipeline_mode = #tpu.pipeline_mode<synchronous>, transform_indices = @transform_4, window_bounds = array<i64: 1, 96>}, {pipeline_mode = #tpu.pipeline_mode<synchronous>, transform_indices = @transform_5, window_bounds = array<i64: 32, 32>}, {pipeline_mode = #tpu.pipeline_mode<synchronous>, transform_indices = @transform_6, window_bounds = array<i64: 1, 32>}, {pipeline_mode = #tpu.pipeline_mode<synchronous>, transform_indices = @transform_7, window_bounds = array<i64: 1, 32>}, {pipeline_mode = #tpu.pipeline_mode<synchronous>, transform_indices = @transform_8, window_bounds = array<i64: 1, 32>}, {pipeline_mode = #tpu.pipeline_mode<synchronous>, transform_indices = @transform_9, window_bounds = array<i64: 32, 128>}, {pipeline_mode = #tpu.pipeline_mode<synchronous>, transform_indices = @transform_10, window_bounds = array<i64: 1, 128>}, {pipeline_mode = #tpu.pipeline_mode<synchronous>, transform_indices = @transform_11, window_bounds = array<i64: 128, 32>}, {pipeline_mode = #tpu.pipeline_mode<synchronous>, transform_indices = @transform_12, window_bounds = array<i64: 1, 32>}, {pipeline_mode = #tpu.pipeline_mode<synchronous>, transform_indices = @transform_13, window_bounds = array<i64: 1, 32>}, {pipeline_mode = #tpu.pipeline_mode<synchronous>, transform_indices = @transform_14, window_bounds = array<i64: 1, 32>}, {pipeline_mode = #tpu.pipeline_mode<synchronous>, transform_indices = @transform_15, window_bounds = array<i64: 32, 32>}, {pipeline_mode = #tpu.pipeline_mode<synchronous>, transform_indices = @transform_16, window_bounds = array<i64: 1, 32>}, {pipeline_mode = #tpu.pipeline_mode<synchronous>, transform_indices = @transform_17, window_bounds = array<i64: 32, 1>}, {pipeline_mode = #tpu.pipeline_mode<synchronous>, transform_indices = @transform_18, window_bounds = array<i64: 32, 1>}, {pipeline_mode = #tpu.pipeline_mode<synchronous>, transform_indices = @transform_19, window_bounds = array<i64: 1, 1>}, {pipeline_mode = #tpu.pipeline_mode<synchronous>, transform_indices = @transform_20, window_bounds = array<i64: 6, 32>}, {pipeline_mode = #tpu.pipeline_mode<synchronous>, transform_indices = @transform_21, window_bounds = array<i64: 32, 32>}, {pipeline_mode = #tpu.pipeline_mode<synchronous>, transform_indices = @transform_22, window_bounds = array<i64: 2, 32>}, {pipeline_mode = #tpu.pipeline_mode<synchronous>, transform_indices = @transform_23, window_bounds = array<i64: 2, 32>}, {pipeline_mode = #tpu.pipeline_mode<synchronous>, transform_indices = @transform_24, window_bounds = array<i64: 2, 6>}, {pipeline_mode = #tpu.pipeline_mode<synchronous>, transform_indices = @transform_25, window_bounds = array<i64: 2, 6>}]} {
    %c0 = arith.constant 0 : index
    %c0_0 = arith.constant 0 : index
    %0 = vector.load %arg1[%c0, %c0_0] : memref<32x32xf32, #tpu.memory_space<vmem>>, vector<32x32xf32>
    %1 = arith.truncf %0 : vector<32x32xf32> to vector<32x32xbf16>
    %c0_1 = arith.constant 0 : index
    %c0_2 = arith.constant 0 : index
    %2 = vector.load %arg4[%c0_1, %c0_2] : memref<32x96xbf16, #tpu.memory_space<vmem>>, vector<32x96xbf16>
    %cst = arith.constant dense<0.000000e+00> : vector<32x96xf32>
    %3 = tpu.matmul %1, %2, %cst {dimension_numbers = #tpu.dot_dimension_numbers<[1], [0], [0], [1], [0, 0, 1, 1], [], []>} : vector<32x32xbf16>, vector<32x96xbf16>, vector<32x96xf32> -> vector<32x96xf32>
    %c0_3 = arith.constant 0 : index
    %c0_4 = arith.constant 0 : index
    %4 = vector.load %arg5[%c0_3, %c0_4] : memref<1x96xf32, #tpu.memory_space<vmem>>, vector<1x96xf32>
    %5 = vector.broadcast %4 : vector<1x96xf32> to vector<32x96xf32>
    %6 = arith.addf %3, %5 : vector<32x96xf32>
    %7 = vector.extract_strided_slice %6 {offsets = [0, 0], sizes = [32, 32], strides = [1, 1]} : vector<32x96xf32> to vector<32x32xf32>
    %8 = vector.extract_strided_slice %6 {offsets = [0, 32], sizes = [32, 32], strides = [1, 1]} : vector<32x96xf32> to vector<32x32xf32>
    %9 = vector.extract_strided_slice %6 {offsets = [0, 64], sizes = [32, 32], strides = [1, 1]} : vector<32x96xf32> to vector<32x32xf32>
    %10 = arith.truncf %7 : vector<32x32xf32> to vector<32x32xbf16>
    %11 = arith.truncf %8 : vector<32x32xf32> to vector<32x32xbf16>
    %cst_5 = arith.constant dense<0.000000e+00> : vector<32x32xf32>
    %12 = tpu.matmul %10, %11, %cst_5 {dimension_numbers = #tpu.dot_dimension_numbers<[1], [1], [0], [0], [0, 0, 1, 0], [], []>} : vector<32x32xbf16>, vector<32x32xbf16>, vector<32x32xf32> -> vector<32x32xf32>
    %cst_6 = arith.constant 0.176776692 : f32
    %13 = vector.broadcast %cst_6 : f32 to vector<32x32xf32>
    %14 = arith.mulf %12, %13 : vector<32x32xf32>
    %c0_7 = arith.constant 0 : index
    %c0_8 = arith.constant 0 : index
    %15 = vector.load %arg2[%c0_7, %c0_8] : memref<32x32xf32, #tpu.memory_space<vmem>>, vector<32x32xf32>
    %16 = arith.addf %14, %15 : vector<32x32xf32>
    %cst_9 = arith.constant dense<0xFF800000> : vector<32xf32>
    %17 = vector.multi_reduction <maximumf>, %16, %cst_9 [1] : vector<32x32xf32> to vector<32xf32>
    %cst_10 = arith.constant 0xFF800000 : f32
    %18 = vector.broadcast %cst_10 : f32 to vector<32xf32>
    %19 = arith.maximumf %18, %17 : vector<32xf32>
    %20 = vector.shape_cast %19 : vector<32xf32> to vector<32x1xf32>
    %21 = vector.broadcast %20 : vector<32x1xf32> to vector<32x32xf32>
    %22 = arith.subf %16, %21 : vector<32x32xf32>
    %23 = math.exp %22 : vector<32x32xf32>
    %cst_11 = arith.constant dense<0.000000e+00> : vector<32xf32>
    %24 = vector.multi_reduction <add>, %23, %cst_11 [1] : vector<32x32xf32> to vector<32xf32>
    %25 = vector.shape_cast %24 : vector<32xf32> to vector<32x1xf32>
    %26 = vector.broadcast %25 : vector<32x1xf32> to vector<32x32xf32>
    %27 = arith.divf %23, %26 : vector<32x32xf32>
    %28 = arith.truncf %27 : vector<32x32xf32> to vector<32x32xbf16>
    %29 = arith.truncf %9 : vector<32x32xf32> to vector<32x32xbf16>
    %cst_12 = arith.constant dense<0.000000e+00> : vector<32x32xf32>
    %30 = tpu.matmul %28, %29, %cst_12 {dimension_numbers = #tpu.dot_dimension_numbers<[1], [0], [0], [1], [0, 0, 1, 1], [], []>} : vector<32x32xbf16>, vector<32x32xbf16>, vector<32x32xf32> -> vector<32x32xf32>
    %31 = arith.truncf %30 : vector<32x32xf32> to vector<32x32xbf16>
    %c0_13 = arith.constant 0 : index
    %c0_14 = arith.constant 0 : index
    %32 = vector.load %arg6[%c0_13, %c0_14] : memref<32x32xbf16, #tpu.memory_space<vmem>>, vector<32x32xbf16>
    %cst_15 = arith.constant dense<0.000000e+00> : vector<32x32xf32>
    %33 = tpu.matmul %31, %32, %cst_15 {dimension_numbers = #tpu.dot_dimension_numbers<[1], [0], [0], [1], [0, 0, 1, 1], [], []>} : vector<32x32xbf16>, vector<32x32xbf16>, vector<32x32xf32> -> vector<32x32xf32>
    %c0_16 = arith.constant 0 : index
    %c0_17 = arith.constant 0 : index
    %34 = vector.load %arg7[%c0_16, %c0_17] : memref<1x32xf32, #tpu.memory_space<vmem>>, vector<1x32xf32>
    %35 = vector.broadcast %34 : vector<1x32xf32> to vector<32x32xf32>
    %36 = arith.addf %33, %35 : vector<32x32xf32>
    %37 = arith.addf %0, %36 : vector<32x32xf32>
    %c0_18 = arith.constant 0 : index
    %c0_19 = arith.constant 0 : index
    %38 = vector.load %arg8[%c0_18, %c0_19] : memref<1x32xf32, #tpu.memory_space<vmem>>, vector<1x32xf32>
    %c0_20 = arith.constant 0 : index
    %c0_21 = arith.constant 0 : index
    %39 = vector.load %arg9[%c0_20, %c0_21] : memref<1x32xf32, #tpu.memory_space<vmem>>, vector<1x32xf32>
    %cst_22 = arith.constant dense<0.000000e+00> : vector<32xf32>
    %40 = vector.multi_reduction <add>, %37, %cst_22 [1] : vector<32x32xf32> to vector<32xf32>
    %41 = vector.shape_cast %40 : vector<32xf32> to vector<32x1xf32>
    %cst_23 = arith.constant 3.200000e+01 : f32
    %42 = vector.broadcast %cst_23 : f32 to vector<32x1xf32>
    %43 = arith.divf %41, %42 : vector<32x1xf32>
    %44 = vector.broadcast %43 : vector<32x1xf32> to vector<32x32xf32>
    %45 = arith.subf %37, %44 : vector<32x32xf32>
    %46 = arith.mulf %45, %45 : vector<32x32xf32>
    %cst_24 = arith.constant dense<0.000000e+00> : vector<32xf32>
    %47 = vector.multi_reduction <add>, %46, %cst_24 [1] : vector<32x32xf32> to vector<32xf32>
    %48 = vector.shape_cast %47 : vector<32xf32> to vector<32x1xf32>
    %cst_25 = arith.constant 3.200000e+01 : f32
    %49 = vector.broadcast %cst_25 : f32 to vector<32x1xf32>
    %50 = arith.divf %48, %49 : vector<32x1xf32>
    %51 = vector.broadcast %43 : vector<32x1xf32> to vector<32x32xf32>
    %52 = arith.subf %37, %51 : vector<32x32xf32>
    %cst_26 = arith.constant 9.99999996E-13 : f32
    %53 = vector.broadcast %cst_26 : f32 to vector<32x1xf32>
    %54 = arith.addf %50, %53 : vector<32x1xf32>
    %55 = math.rsqrt %54 : vector<32x1xf32>
    %56 = vector.broadcast %55 : vector<32x1xf32> to vector<32x32xf32>
    %57 = arith.mulf %52, %56 : vector<32x32xf32>
    %58 = vector.broadcast %38 : vector<1x32xf32> to vector<32x32xf32>
    %59 = arith.mulf %57, %58 : vector<32x32xf32>
    %60 = vector.broadcast %39 : vector<1x32xf32> to vector<32x32xf32>
    %61 = arith.addf %59, %60 : vector<32x32xf32>
    %62 = arith.truncf %61 : vector<32x32xf32> to vector<32x32xbf16>
    %c0_27 = arith.constant 0 : index
    %c0_28 = arith.constant 0 : index
    %63 = vector.load %arg10[%c0_27, %c0_28] : memref<32x128xbf16, #tpu.memory_space<vmem>>, vector<32x128xbf16>
    %cst_29 = arith.constant dense<0.000000e+00> : vector<32x128xf32>
    %64 = tpu.matmul %62, %63, %cst_29 {dimension_numbers = #tpu.dot_dimension_numbers<[1], [0], [0], [1], [0, 0, 1, 1], [], []>} : vector<32x32xbf16>, vector<32x128xbf16>, vector<32x128xf32> -> vector<32x128xf32>
    %c0_30 = arith.constant 0 : index
    %c0_31 = arith.constant 0 : index
    %65 = vector.load %arg11[%c0_30, %c0_31] : memref<1x128xf32, #tpu.memory_space<vmem>>, vector<1x128xf32>
    %66 = vector.broadcast %65 : vector<1x128xf32> to vector<32x128xf32>
    %67 = arith.addf %64, %66 : vector<32x128xf32>
    %68 = arith.mulf %67, %67 : vector<32x128xf32>
    %69 = arith.mulf %67, %68 : vector<32x128xf32>
    %cst_32 = arith.constant 4.471500e-02 : f32
    %70 = vector.broadcast %cst_32 : f32 to vector<32x128xf32>
    %71 = arith.mulf %70, %69 : vector<32x128xf32>
    %72 = arith.addf %67, %71 : vector<32x128xf32>
    %cst_33 = arith.constant 0.797884583 : f32
    %73 = vector.broadcast %cst_33 : f32 to vector<32x128xf32>
    %74 = arith.mulf %73, %72 : vector<32x128xf32>
    %75 = math.tanh %74 : vector<32x128xf32>
    %cst_34 = arith.constant 1.000000e+00 : f32
    %76 = vector.broadcast %cst_34 : f32 to vector<32x128xf32>
    %77 = arith.addf %76, %75 : vector<32x128xf32>
    %cst_35 = arith.constant 5.000000e-01 : f32
    %78 = vector.broadcast %cst_35 : f32 to vector<32x128xf32>
    %79 = arith.mulf %78, %77 : vector<32x128xf32>
    %80 = arith.mulf %67, %79 : vector<32x128xf32>
    %81 = arith.truncf %80 : vector<32x128xf32> to vector<32x128xbf16>
    %c0_36 = arith.constant 0 : index
    %c0_37 = arith.constant 0 : index
    %82 = vector.load %arg12[%c0_36, %c0_37] : memref<128x32xbf16, #tpu.memory_space<vmem>>, vector<128x32xbf16>
    %cst_38 = arith.constant dense<0.000000e+00> : vector<32x32xf32>
    %83 = tpu.matmul %81, %82, %cst_38 {dimension_numbers = #tpu.dot_dimension_numbers<[1], [0], [0], [1], [0, 0, 1, 1], [], []>} : vector<32x128xbf16>, vector<128x32xbf16>, vector<32x32xf32> -> vector<32x32xf32>
    %c0_39 = arith.constant 0 : index
    %c0_40 = arith.constant 0 : index
    %84 = vector.load %arg13[%c0_39, %c0_40] : memref<1x32xf32, #tpu.memory_space<vmem>>, vector<1x32xf32>
    %85 = vector.broadcast %84 : vector<1x32xf32> to vector<32x32xf32>
    %86 = arith.addf %83, %85 : vector<32x32xf32>
    %87 = arith.addf %61, %86 : vector<32x32xf32>
    %c0_41 = arith.constant 0 : index
    %c0_42 = arith.constant 0 : index
    %88 = vector.load %arg14[%c0_41, %c0_42] : memref<1x32xf32, #tpu.memory_space<vmem>>, vector<1x32xf32>
    %c0_43 = arith.constant 0 : index
    %c0_44 = arith.constant 0 : index
    %89 = vector.load %arg15[%c0_43, %c0_44] : memref<1x32xf32, #tpu.memory_space<vmem>>, vector<1x32xf32>
    %cst_45 = arith.constant dense<0.000000e+00> : vector<32xf32>
    %90 = vector.multi_reduction <add>, %87, %cst_45 [1] : vector<32x32xf32> to vector<32xf32>
    %91 = vector.shape_cast %90 : vector<32xf32> to vector<32x1xf32>
    %cst_46 = arith.constant 3.200000e+01 : f32
    %92 = vector.broadcast %cst_46 : f32 to vector<32x1xf32>
    %93 = arith.divf %91, %92 : vector<32x1xf32>
    %94 = vector.broadcast %93 : vector<32x1xf32> to vector<32x32xf32>
    %95 = arith.subf %87, %94 : vector<32x32xf32>
    %96 = arith.mulf %95, %95 : vector<32x32xf32>
    %cst_47 = arith.constant dense<0.000000e+00> : vector<32xf32>
    %97 = vector.multi_reduction <add>, %96, %cst_47 [1] : vector<32x32xf32> to vector<32xf32>
    %98 = vector.shape_cast %97 : vector<32xf32> to vector<32x1xf32>
    %cst_48 = arith.constant 3.200000e+01 : f32
    %99 = vector.broadcast %cst_48 : f32 to vector<32x1xf32>
    %100 = arith.divf %98, %99 : vector<32x1xf32>
    %101 = vector.broadcast %93 : vector<32x1xf32> to vector<32x32xf32>
    %102 = arith.subf %87, %101 : vector<32x32xf32>
    %cst_49 = arith.constant 9.99999996E-13 : f32
    %103 = vector.broadcast %cst_49 : f32 to vector<32x1xf32>
    %104 = arith.addf %100, %103 : vector<32x1xf32>
    %105 = math.rsqrt %104 : vector<32x1xf32>
    %106 = vector.broadcast %105 : vector<32x1xf32> to vector<32x32xf32>
    %107 = arith.mulf %102, %106 : vector<32x32xf32>
    %108 = vector.broadcast %88 : vector<1x32xf32> to vector<32x32xf32>
    %109 = arith.mulf %107, %108 : vector<32x32xf32>
    %110 = vector.broadcast %89 : vector<1x32xf32> to vector<32x32xf32>
    %111 = arith.addf %109, %110 : vector<32x32xf32>
    %c0_50 = arith.constant 0 : index
    %c0_51 = arith.constant 0 : index
    %112 = vector.load %arg22[%c0_50, %c0_51] : memref<32x32xf32, #tpu.memory_space<vmem>>, vector<32x32xf32>
    tpu.vector_store %arg22[%c0_50, %c0_51], %111 {strides = array<i32>} : memref<32x32xf32, #tpu.memory_space<vmem>>, vector<32x32xf32>,
    %c0_52 = arith.constant 0 : index
    %c0_53 = arith.constant 0 : index
    %113 = vector.load %arg3[%c0_52, %c0_53] : memref<2x32xf32, #tpu.memory_space<vmem>>, vector<2x32xf32>
    %cst_54 = arith.constant dense<0.000000e+00> : vector<2x32xf32>
    %114 = tpu.matmul %113, %111, %cst_54 {dimension_numbers = #tpu.dot_dimension_numbers<[1], [0], [0], [1], [0, 0, 1, 1], [], []>} : vector<2x32xf32>, vector<32x32xf32>, vector<2x32xf32> -> vector<2x32xf32>
    %c0_55 = arith.constant 0 : index
    %c0_56 = arith.constant 0 : index
    %115 = vector.load %arg23[%c0_55, %c0_56] : memref<2x32xf32, #tpu.memory_space<vmem>>, vector<2x32xf32>
    tpu.vector_store %arg23[%c0_55, %c0_56], %114 {strides = array<i32>} : memref<2x32xf32, #tpu.memory_space<vmem>>, vector<2x32xf32>,
    %116 = arith.truncf %114 : vector<2x32xf32> to vector<2x32xbf16>
    %c0_57 = arith.constant 0 : index
    %c0_58 = arith.constant 0 : index
    %117 = vector.load %arg16[%c0_57, %c0_58] : memref<32x32xbf16, #tpu.memory_space<vmem>>, vector<32x32xbf16>
    %cst_59 = arith.constant dense<0.000000e+00> : vector<2x32xf32>
    %118 = tpu.matmul %116, %117, %cst_59 {dimension_numbers = #tpu.dot_dimension_numbers<[1], [0], [0], [1], [0, 0, 1, 1], [], []>} : vector<2x32xbf16>, vector<32x32xbf16>, vector<2x32xf32> -> vector<2x32xf32>
    %c0_60 = arith.constant 0 : index
    %c0_61 = arith.constant 0 : index
    %119 = vector.load %arg17[%c0_60, %c0_61] : memref<1x32xf32, #tpu.memory_space<vmem>>, vector<1x32xf32>
    %120 = vector.broadcast %119 : vector<1x32xf32> to vector<2x32xf32>
    %121 = arith.addf %118, %120 : vector<2x32xf32>
    %122 = math.tanh %121 : vector<2x32xf32>
    %c0_62 = arith.constant 0 : index
    %c0_63 = arith.constant 0 : index
    %123 = vector.load %arg24[%c0_62, %c0_63] : memref<2x32xf32, #tpu.memory_space<vmem>>, vector<2x32xf32>
    tpu.vector_store %arg24[%c0_62, %c0_63], %122 {strides = array<i32>} : memref<2x32xf32, #tpu.memory_space<vmem>>, vector<2x32xf32>,
    %c0_64 = arith.constant 0 : index
    %c0_65 = arith.constant 0 : index
    %124 = vector.load %arg21[%c0_64, %c0_65] : memref<6x32xf32, #tpu.memory_space<vmem>>, vector<6x32xf32>
    %c0_66 = arith.constant 0 : index
    %c0_67 = arith.constant 0 : index
    %125 = vector.load %arg18[%c0_66, %c0_67] : memref<32x1xbf16, #tpu.memory_space<vmem>>, vector<32x1xbf16>
    %126 = arith.truncf %124 : vector<6x32xf32> to vector<6x32xbf16>
    %cst_68 = arith.constant dense<0.000000e+00> : vector<1x6xf32>
    %127 = tpu.matmul %125, %126, %cst_68 {dimension_numbers = #tpu.dot_dimension_numbers<[0], [1], [1], [0], [0, 1, 1, 0], [], []>} : vector<32x1xbf16>, vector<6x32xbf16>, vector<1x6xf32> -> vector<1x6xf32>
    %128 = arith.truncf %114 : vector<2x32xf32> to vector<2x32xbf16>
    %c0_69 = arith.constant 0 : index
    %c0_70 = arith.constant 0 : index
    %129 = vector.load %arg19[%c0_69, %c0_70] : memref<32x1xbf16, #tpu.memory_space<vmem>>, vector<32x1xbf16>
    %cst_71 = arith.constant dense<0.000000e+00> : vector<2x1xf32>
    %130 = tpu.matmul %128, %129, %cst_71 {dimension_numbers = #tpu.dot_dimension_numbers<[1], [0], [0], [1], [0, 0, 1, 1], [], []>} : vector<2x32xbf16>, vector<32x1xbf16>, vector<2x1xf32> -> vector<2x1xf32>
    %131 = vector.broadcast %130 : vector<2x1xf32> to vector<2x6xf32>
    %132 = vector.broadcast %127 : vector<1x6xf32> to vector<2x6xf32>
    %133 = arith.addf %131, %132 : vector<2x6xf32>
    %c0_72 = arith.constant 0 : index
    %c0_73 = arith.constant 0 : index
    %134 = vector.load %arg20[%c0_72, %c0_73] : memref<1x1xf32, #tpu.memory_space<vmem>>, vector<1x1xf32>
    %135 = vector.broadcast %134 : vector<1x1xf32> to vector<2x6xf32>
    %136 = arith.addf %133, %135 : vector<2x6xf32>
    %137 = arith.negf %136 : vector<2x6xf32>
    %138 = math.exp %137 : vector<2x6xf32>
    %cst_74 = arith.constant 1.000000e+00 : f32
    %139 = vector.broadcast %cst_74 : f32 to vector<2x6xf32>
    %140 = arith.addf %139, %138 : vector<2x6xf32>
    %141 = arith.divf %139, %140 : vector<2x6xf32>
    %c0_75 = arith.constant 0 : index
    %c0_76 = arith.constant 0 : index
    %142 = vector.load %arg25[%c0_75, %c0_76] : memref<2x6xf32, #tpu.memory_space<vmem>>, vector<2x6xf32>
    tpu.vector_store %arg25[%c0_75, %c0_76], %141 {strides = array<i32>} : memref<2x6xf32, #tpu.memory_space<vmem>>, vector<2x6xf32>,
    %cst_77 = arith.constant dense<0xFF800000> : vector<2xf32>
    %143 = vector.multi_reduction <maximumf>, %141, %cst_77 [1] : vector<2x6xf32> to vector<2xf32>
    %cst_78 = arith.constant 0xFF800000 : f32
    %144 = vector.broadcast %cst_78 : f32 to vector<2xf32>
    %145 = arith.maximumf %144, %143 : vector<2xf32>
    %146 = vector.shape_cast %145 : vector<2xf32> to vector<2x1xf32>
    %147 = vector.broadcast %146 : vector<2x1xf32> to vector<2x6xf32>
    %148 = arith.subf %141, %147 : vector<2x6xf32>
    %149 = math.exp %148 : vector<2x6xf32>
    %cst_79 = arith.constant dense<0.000000e+00> : vector<2xf32>
    %150 = vector.multi_reduction <add>, %149, %cst_79 [1] : vector<2x6xf32> to vector<2xf32>
    %151 = vector.shape_cast %150 : vector<2xf32> to vector<2x1xf32>
    %152 = vector.broadcast %151 : vector<2x1xf32> to vector<2x6xf32>
    %153 = arith.divf %149, %152 : vector<2x6xf32>
    %c0_80 = arith.constant 0 : index
    %c0_81 = arith.constant 0 : index
    %154 = vector.load %arg26[%c0_80, %c0_81] : memref<2x6xf32, #tpu.memory_space<vmem>>, vector<2x6xf32>
    tpu.vector_store %arg26[%c0_80, %c0_81], %153 {strides = array<i32>} : memref<2x6xf32, #tpu.memory_space<vmem>>, vector<2x6xf32>,
    return
  }
  func.func @transform_0(%arg0: i32) -> (i32, i32) {
    %c0_i32 = arith.constant 0 : i32
    %c0_i32_0 = arith.constant 0 : i32
    %c0_i32_1 = arith.constant 0 : i32
    return %c0_i32, %c0_i32_0 : i32, i32
  }
  func.func @transform_1(%arg0: i32) -> (i32, i32) {
    %c0_i32 = arith.constant 0 : i32
    %c0_i32_0 = arith.constant 0 : i32
    %c0_i32_1 = arith.constant 0 : i32
    return %c0_i32, %c0_i32_0 : i32, i32
  }
  func.func @transform_2(%arg0: i32) -> (i32, i32) {
    %c0_i32 = arith.constant 0 : i32
    %c0_i32_0 = arith.constant 0 : i32
    %c0_i32_1 = arith.constant 0 : i32
    return %c0_i32, %c0_i32_0 : i32, i32
  }
  func.func @transform_3(%arg0: i32) -> (i32, i32) {
    %c0_i32 = arith.constant 0 : i32
    %c0_i32_0 = arith.constant 0 : i32
    %c0_i32_1 = arith.constant 0 : i32
    return %c0_i32, %c0_i32_0 : i32, i32
  }
  func.func @transform_4(%arg0: i32) -> (i32, i32) {
    %c0_i32 = arith.constant 0 : i32
    %c0_i32_0 = arith.constant 0 : i32
    %c0_i32_1 = arith.constant 0 : i32
    return %c0_i32, %c0_i32_0 : i32, i32
  }
  func.func @transform_5(%arg0: i32) -> (i32, i32) {
    %c0_i32 = arith.constant 0 : i32
    %c0_i32_0 = arith.constant 0 : i32
    %c0_i32_1 = arith.constant 0 : i32
    return %c0_i32, %c0_i32_0 : i32, i32
  }
  func.func @transform_6(%arg0: i32) -> (i32, i32) {
    %c0_i32 = arith.constant 0 : i32
    %c0_i32_0 = arith.constant 0 : i32
    %c0_i32_1 = arith.constant 0 : i32
    return %c0_i32, %c0_i32_0 : i32, i32
  }
  func.func @transform_7(%arg0: i32) -> (i32, i32) {
    %c0_i32 = arith.constant 0 : i32
    %c0_i32_0 = arith.constant 0 : i32
    %c0_i32_1 = arith.constant 0 : i32
    return %c0_i32, %c0_i32_0 : i32, i32
  }
  func.func @transform_8(%arg0: i32) -> (i32, i32) {
    %c0_i32 = arith.constant 0 : i32
    %c0_i32_0 = arith.constant 0 : i32
    %c0_i32_1 = arith.constant 0 : i32
    return %c0_i32, %c0_i32_0 : i32, i32
  }
  func.func @transform_9(%arg0: i32) -> (i32, i32) {
    %c0_i32 = arith.constant 0 : i32
    %c0_i32_0 = arith.constant 0 : i32
    %c0_i32_1 = arith.constant 0 : i32
    return %c0_i32, %c0_i32_0 : i32, i32
  }
  func.func @transform_10(%arg0: i32) -> (i32, i32) {
    %c0_i32 = arith.constant 0 : i32
    %c0_i32_0 = arith.constant 0 : i32
    %c0_i32_1 = arith.constant 0 : i32
    return %c0_i32, %c0_i32_0 : i32, i32
  }
  func.func @transform_11(%arg0: i32) -> (i32, i32) {
    %c0_i32 = arith.constant 0 : i32
    %c0_i32_0 = arith.constant 0 : i32
    %c0_i32_1 = arith.constant 0 : i32
    return %c0_i32, %c0_i32_0 : i32, i32
  }
  func.func @transform_12(%arg0: i32) -> (i32, i32) {
    %c0_i32 = arith.constant 0 : i32
    %c0_i32_0 = arith.constant 0 : i32
    %c0_i32_1 = arith.constant 0 : i32
    return %c0_i32, %c0_i32_0 : i32, i32
  }
  func.func @transform_13(%arg0: i32) -> (i32, i32) {
    %c0_i32 = arith.constant 0 : i32
    %c0_i32_0 = arith.constant 0 : i32
    %c0_i32_1 = arith.constant 0 : i32
    return %c0_i32, %c0_i32_0 : i32, i32
  }
  func.func @transform_14(%arg0: i32) -> (i32, i32) {
    %c0_i32 = arith.constant 0 : i32
    %c0_i32_0 = arith.constant 0 : i32
    %c0_i32_1 = arith.constant 0 : i32
    return %c0_i32, %c0_i32_0 : i32, i32
  }
  func.func @transform_15(%arg0: i32) -> (i32, i32) {
    %c0_i32 = arith.constant 0 : i32
    %c0_i32_0 = arith.constant 0 : i32
    %c0_i32_1 = arith.constant 0 : i32
    return %c0_i32, %c0_i32_0 : i32, i32
  }
  func.func @transform_16(%arg0: i32) -> (i32, i32) {
    %c0_i32 = arith.constant 0 : i32
    %c0_i32_0 = arith.constant 0 : i32
    %c0_i32_1 = arith.constant 0 : i32
    return %c0_i32, %c0_i32_0 : i32, i32
  }
  func.func @transform_17(%arg0: i32) -> (i32, i32) {
    %c0_i32 = arith.constant 0 : i32
    %c0_i32_0 = arith.constant 0 : i32
    %c0_i32_1 = arith.constant 0 : i32
    return %c0_i32, %c0_i32_0 : i32, i32
  }
  func.func @transform_18(%arg0: i32) -> (i32, i32) {
    %c0_i32 = arith.constant 0 : i32
    %c0_i32_0 = arith.constant 0 : i32
    %c0_i32_1 = arith.constant 0 : i32
    return %c0_i32, %c0_i32_0 : i32, i32
  }
  func.func @transform_19(%arg0: i32) -> (i32, i32) {
    %c0_i32 = arith.constant 0 : i32
    %c0_i32_0 = arith.constant 0 : i32
    %c0_i32_1 = arith.constant 0 : i32
    return %c0_i32, %c0_i32_0 : i32, i32
  }
  func.func @transform_20(%arg0: i32) -> (i32, i32) {
    %c0_i32 = arith.constant 0 : i32
    %c0_i32_0 = arith.constant 0 : i32
    %c0_i32_1 = arith.constant 0 : i32
    return %c0_i32, %c0_i32_0 : i32, i32
  }
  func.func @transform_21(%arg0: i32) -> (i32, i32) {
    %c0_i32 = arith.constant 0 : i32
    %c0_i32_0 = arith.constant 0 : i32
    %c0_i32_1 = arith.constant 0 : i32
    return %c0_i32, %c0_i32_0 : i32, i32
  }
  func.func @transform_22(%arg0: i32) -> (i32, i32) {
    %c0_i32 = arith.constant 0 : i32
    %c0_i32_0 = arith.constant 0 : i32
    %c0_i32_1 = arith.constant 0 : i32
    return %c0_i32, %c0_i32_0 : i32, i32
  }
  func.func @transform_23(%arg0: i32) -> (i32, i32) {
    %c0_i32 = arith.constant 0 : i32
    %c0_i32_0 = arith.constant 0 : i32
    %c0_i32_1 = arith.constant 0 : i32
    return %c0_i32, %c0_i32_0 : i32, i32
  }
  func.func @transform_24(%arg0: i32) -> (i32, i32) {
    %c0_i32 = arith.constant 0 : i32
    %c0_i32_0 = arith.constant 0 : i32
    %c0_i32_1 = arith.constant 0 : i32
    return %c0_i32, %c0_i32_0 : i32, i32
  }
  func.func @transform_25(%arg0: i32) -> (i32, i32) {
    %c0_i32 = arith.constant 0 : i32
    %c0_i32_0 = arith.constant 0 : i32
    %c0_i32_1 = arith.constant 0 : i32
    return %c0_i32, %c0_i32_0 : i32, i32
  }
}

</mosaic_0001>

<llo_original>
// kernel: tpu_custom_call.1
$region0: #{tpu_custom_call.1}
  #allocation0 [shape = 'u32[]', space=smem, size = 0x4, offset = 0x4, fixed_abs, tag = 'smem constant byte address 0x4 - core index']
  #allocation1 [shape = 'u32[72,128]{1,0:T(1,128)}', space=vmem, size = 0x9000, scoped, tag = 'internal scratch']
  #allocation2 [shape = 'f32[1,1]{1,0:T(1,128)S(1)}', space=vmem, size = 0x200, scoped, tag = 'scoped memory for tpu_custom_call.1']
  %s0 = inlined_call_operand.vmem [shape: f32[32,32], index: 0, kind: input, shape index: {}]
  %s1 = inlined_call_operand.vmem [shape: f32[32,32], index: 1, kind: input, shape index: {}]
  %s2 = inlined_call_operand.hbm [shape: f32[2,32], index: 2, kind: input, shape index: {}]
  %s3 = inlined_call_operand.vmem [shape: bf16[32,96], index: 3, kind: input, shape index: {}]
  %s4 = inlined_call_operand.vmem [shape: f32[1,96], index: 4, kind: input, shape index: {}]
  %s5 = inlined_call_operand.vmem [shape: bf16[32,32], index: 5, kind: input, shape index: {}]
  %s6 = inlined_call_operand.hbm [shape: f32[1,32], index: 6, kind: input, shape index: {}]
  %s7 = inlined_call_operand.hbm [shape: f32[1,32], index: 7, kind: input, shape index: {}]
  %s8 = inlined_call_operand.hbm [shape: f32[1,32], index: 8, kind: input, shape index: {}]
  %s9 = inlined_call_operand.hbm [shape: bf16[32,128], index: 9, kind: input, shape index: {}]
  %s10 = inlined_call_operand.vmem [shape: f32[1,128], index: 10, kind: input, shape index: {}]
  %s11 = inlined_call_operand.vmem [shape: bf16[128,32], index: 11, kind: input, shape index: {}]
  %s12 = inlined_call_operand.vmem [shape: f32[1,32], index: 12, kind: input, shape index: {}]
  %s13 = inlined_call_operand.vmem [shape: f32[1,32], index: 13, kind: input, shape index: {}]
  %s14 = inlined_call_operand.vmem [shape: f32[1,32], index: 14, kind: input, shape index: {}]
  %s15 = inlined_call_operand.hbm [shape: bf16[32,32], index: 15, kind: input, shape index: {}]
  %s16 = inlined_call_operand.vmem [shape: f32[1,32], index: 16, kind: input, shape index: {}]
  %s17 = inlined_call_operand.vmem [shape: bf16[32,1], index: 17, kind: input, shape index: {}]
  %s18 = inlined_call_operand.vmem [shape: bf16[32,1], index: 18, kind: input, shape index: {}]
  %s19 = inlined_call_operand.<no memory space> [shape: f32[1,1], index: 19, kind: input, shape index: {}]
  %s20 = inlined_call_operand.vmem [shape: f32[6,32], index: 20, kind: input, shape index: {}]
  %s21 = inlined_call_operand.hbm [shape: f32[32,32], index: 21, kind: output, shape index: {0}]
  %s22 = inlined_call_operand.hbm [shape: f32[2,32], index: 22, kind: output, shape index: {1}]
  %s23 = inlined_call_operand.hbm [shape: f32[2,32], index: 23, kind: output, shape index: {2}]
  %s24 = inlined_call_operand.hbm [shape: f32[2,6], index: 24, kind: output, shape index: {3}]
  %s25 = inlined_call_operand.hbm [shape: f32[2,6], index: 25, kind: output, shape index: {4}]
  %26 = xla_tuple %s21, %s22, %s23, %s24, %s25
  %s27 = sld [smem:[#allocation0]]
  $region150: #{tpu_custom_call.1} parent=0
    _
  %s29 = ssub.s32 1, %s27
  %s30 = scalar_select 0, %s29, %s27
  %v31 = vstv %s19
  %32 = vst [vmem:[#allocation2] sm:$0x1] %v31
  $region1: #{tpu_custom_call.1} parent=0
    #allocation3 [shape = 'u8[1024]{0}', space=vmem, size = 0x400, scoped, tag = 'input window, operand 2, single buffered']
    #allocation4 [shape = 's32[1]{0}', space=sflag, size = 0x4, scoped, tag = 'scoped memory for tpu_custom_call.1']
    #allocation5 [shape = 's32[1]{0}', space=sflag, size = 0x4, scoped, tag = 'scoped memory for tpu_custom_call.1']
    #allocation6 [shape = 'u8[512]{0}', space=vmem, size = 0x400, scoped, tag = 'input window, operand 6, single buffered']
    #allocation7 [shape = 's32[1]{0}', space=sflag, size = 0x4, scoped, tag = 'scoped memory for tpu_custom_call.1']
    #allocation8 [shape = 'u8[512]{0}', space=vmem, size = 0x400, scoped, tag = 'input window, operand 7, single buffered']
    #allocation9 [shape = 'u8[512]{0}', space=vmem, size = 0x400, scoped, tag = 'input window, operand 8, single buffered']
    #allocation10 [shape = 's32[1]{0}', space=sflag, size = 0x4, scoped, tag = 'scoped memory for tpu_custom_call.1']
    #allocation11 [shape = 'u8[8192]{0}', space=vmem, size = 0x2000, scoped, tag = 'input window, operand 9, single buffered']
    #allocation12 [shape = 'u8[8192]{0}', space=vmem, size = 0x2000, scoped, tag = 'input window, operand 15, single buffered']
    #allocation13 [shape = 's32[1]{0}', space=sflag, size = 0x4, scoped, tag = 'scoped memory for tpu_custom_call.1']
    #allocation14 [shape = 'u8[16384]{0}', space=vmem, size = 0x4000, scoped, tag = 'output window, operand 0, single buffered']
    #allocation15 [shape = 'u8[1024]{0}', space=vmem, size = 0x400, scoped, tag = 'output window, operand 1, single buffered']
    #allocation16 [shape = 's32[1]{0}', space=sflag, size = 0x4, scoped, tag = 'scoped memory for tpu_custom_call.1']
    #allocation17 [shape = 'u8[1024]{0}', space=vmem, size = 0x400, scoped, tag = 'output window, operand 2, single buffered']
    #allocation18 [shape = 'u8[1024]{0}', space=vmem, size = 0x400, scoped, tag = 'output window, operand 3, single buffered']
    #allocation19 [shape = 's32[1]{0}', space=sflag, size = 0x4, scoped, tag = 'scoped memory for tpu_custom_call.1']
    #allocation20 [shape = 'u8[1024]{0}', space=vmem, size = 0x400, scoped, tag = 'output window, operand 4, single buffered']
    %33 = vsyncpa [#allocation4], 0
    %34 = vsyncpa [#allocation7], 0
    %35 = vsyncpa [#allocation10], 0
    %36 = vsyncpa [#allocation13], 0
    %37 = vsyncpa [#allocation5], 0
    %38 = vsyncpa [#allocation16], 0
    %39 = vsyncpa [#allocation19], 0
    // Predicated region
    $region2: #{tpu_custom_call.1} parent=1 // pred_check
      _
    $region3: #{tpu_custom_call.1} parent=1 // pred_check_branch
      %41 = sbr.rel (0) target = $region5
    $region4: #{tpu_custom_call.1} parent=1 // pred_region
      _
    $region5: #{tpu_custom_call.1} parent=1 // pred_fallthru
      _
    // Predicated region
    $region6: #{tpu_custom_call.1} parent=1 // pred_check
      _
    $region7: #{tpu_custom_call.1} parent=1 // pred_check_branch
      %43 = sbr.rel (0) target = $region9
    $region8: #{tpu_custom_call.1} parent=1 // pred_region
      _
    $region9: #{tpu_custom_call.1} parent=1 // pred_fallthru
      _
    // Predicated region
    $region10: #{tpu_custom_call.1} parent=1 // pred_check
      _
    $region11: #{tpu_custom_call.1} parent=1 // pred_check_branch
      %45 = sbr.rel (0) target = $region13
    $region12: #{tpu_custom_call.1} parent=1 // pred_region
      %47 = vsyncadd [#allocation4], 0
      %s49 = sshll.u32 %s2, 4
      %s50 = int_to_ptr.hbm [resolvable:$true] %s49
      %s51 = sshll.u32 [#allocation3], 4
      %s52 = int_to_ptr.vmem [resolvable:$true] %s51
      %54 = dma.hbm_to_vmem [thread:$0]  %s50, 32, %s52, [#allocation4]
    $region13: #{tpu_custom_call.1} parent=1 // pred_fallthru
      _
    // Predicated region
    $region14: #{tpu_custom_call.1} parent=1 // pred_check
      _
    $region15: #{tpu_custom_call.1} parent=1 // pred_check_branch
      %56 = sbr.rel (0) target = $region17
    $region16: #{tpu_custom_call.1} parent=1 // pred_region
      _
    $region17: #{tpu_custom_call.1} parent=1 // pred_fallthru
      _
    // Predicated region
    $region18: #{tpu_custom_call.1} parent=1 // pred_check
      _
    $region19: #{tpu_custom_call.1} parent=1 // pred_check_branch
      %58 = sbr.rel (0) target = $region21
    $region20: #{tpu_custom_call.1} parent=1 // pred_region
      _
    $region21: #{tpu_custom_call.1} parent=1 // pred_fallthru
      _
    // Predicated region
    $region22: #{tpu_custom_call.1} parent=1 // pred_check
      _
    $region23: #{tpu_custom_call.1} parent=1 // pred_check_branch
      %60 = sbr.rel (0) target = $region25
    $region24: #{tpu_custom_call.1} parent=1 // pred_region
      _
    $region25: #{tpu_custom_call.1} parent=1 // pred_fallthru
      _
    // Predicated region
    $region26: #{tpu_custom_call.1} parent=1 // pred_check
      _
    $region27: #{tpu_custom_call.1} parent=1 // pred_check_branch
      %62 = sbr.rel (0) target = $region29
    $region28: #{tpu_custom_call.1} parent=1 // pred_region
      %64 = vsyncadd [#allocation7], 0
      %s66 = sshll.u32 %s6, 4
      %s67 = int_to_ptr.hbm [resolvable:$true] %s66
      %s68 = sshll.u32 [#allocation6], 4
      %s69 = int_to_ptr.vmem [resolvable:$true] %s68
      %71 = dma.hbm_to_vmem [thread:$0]  %s67, 16, %s69, [#allocation7]
    $region29: #{tpu_custom_call.1} parent=1 // pred_fallthru
      _
    // Predicated region
    $region30: #{tpu_custom_call.1} parent=1 // pred_check
      _
    $region31: #{tpu_custom_call.1} parent=1 // pred_check_branch
      %73 = sbr.rel (0) target = $region33
    $region32: #{tpu_custom_call.1} parent=1 // pred_region
      %75 = vsyncadd [#allocation7], 0
      %s77 = sshll.u32 %s7, 4
      %s78 = int_to_ptr.hbm [resolvable:$true] %s77
      %s79 = sshll.u32 [#allocation8], 4
      %s80 = int_to_ptr.vmem [resolvable:$true] %s79
      %82 = dma.hbm_to_vmem [thread:$0]  %s78, 16, %s80, [#allocation7]
    $region33: #{tpu_custom_call.1} parent=1 // pred_fallthru
      _
    // Predicated region
    $region34: #{tpu_custom_call.1} parent=1 // pred_check
      _
    $region35: #{tpu_custom_call.1} parent=1 // pred_check_branch
      %84 = sbr.rel (0) target = $region37
    $region36: #{tpu_custom_call.1} parent=1 // pred_region
      %86 = vsyncadd [#allocation10], 0
      %s88 = sshll.u32 %s8, 4
      %s89 = int_to_ptr.hbm [resolvable:$true] %s88
      %s90 = sshll.u32 [#allocation9], 4
      %s91 = int_to_ptr.vmem [resolvable:$true] %s90
      %93 = dma.hbm_to_vmem [thread:$0]  %s89, 16, %s91, [#allocation10]
    $region37: #{tpu_custom_call.1} parent=1 // pred_fallthru
      _
    // Predicated region
    $region38: #{tpu_custom_call.1} parent=1 // pred_check
      _
    $region39: #{tpu_custom_call.1} parent=1 // pred_check_branch
      %95 = sbr.rel (0) target = $region41
    $region40: #{tpu_custom_call.1} parent=1 // pred_region
      %97 = vsyncadd [#allocation10], 0
      %s98 = sshll.u32 %s9, 4
      %s99 = int_to_ptr.hbm [resolvable:$true] %s98
      %s100 = sshll.u32 [#allocation11], 4
      %s101 = int_to_ptr.vmem [resolvable:$true] %s100
      %106 = dma.hbm_to_vmem [thread:$0]  %s99, 256, %s101, [#allocation10], 64, 64, 4
    $region41: #{tpu_custom_call.1} parent=1 // pred_fallthru
      _
    // Predicated region
    $region42: #{tpu_custom_call.1} parent=1 // pred_check
      _
    $region43: #{tpu_custom_call.1} parent=1 // pred_check_branch
      %108 = sbr.rel (0) target = $region45
    $region44: #{tpu_custom_call.1} parent=1 // pred_region
      _
    $region45: #{tpu_custom_call.1} parent=1 // pred_fallthru
      _
    // Predicated region
    $region46: #{tpu_custom_call.1} parent=1 // pred_check
      _
    $region47: #{tpu_custom_call.1} parent=1 // pred_check_branch
      %110 = sbr.rel (0) target = $region49
    $region48: #{tpu_custom_call.1} parent=1 // pred_region
      _
    $region49: #{tpu_custom_call.1} parent=1 // pred_fallthru
      _
    // Predicated region
    $region50: #{tpu_custom_call.1} parent=1 // pred_check
      _
    $region51: #{tpu_custom_call.1} parent=1 // pred_check_branch
      %112 = sbr.rel (0) target = $region53
    $region52: #{tpu_custom_call.1} parent=1 // pred_region
      _
    $region53: #{tpu_custom_call.1} parent=1 // pred_fallthru
      _
    // Predicated region
    $region54: #{tpu_custom_call.1} parent=1 // pred_check
      _
    $region55: #{tpu_custom_call.1} parent=1 // pred_check_branch
      %114 = sbr.rel (0) target = $region57
    $region56: #{tpu_custom_call.1} parent=1 // pred_region
      _
    $region57: #{tpu_custom_call.1} parent=1 // pred_fallthru
      _
    // Predicated region
    $region58: #{tpu_custom_call.1} parent=1 // pred_check
      _
    $region59: #{tpu_custom_call.1} parent=1 // pred_check_branch
      %116 = sbr.rel (0) target = $region61
    $region60: #{tpu_custom_call.1} parent=1 // pred_region
      _
    $region61: #{tpu_custom_call.1} parent=1 // pred_fallthru
      _
    // Predicated region
    $region62: #{tpu_custom_call.1} parent=1 // pred_check
      _
    $region63: #{tpu_custom_call.1} parent=1 // pred_check_branch
      %118 = sbr.rel (0) target = $region65
    $region64: #{tpu_custom_call.1} parent=1 // pred_region
      %120 = vsyncadd [#allocation13], 0
      %s121 = sshll.u32 %s15, 4
      %s122 = int_to_ptr.hbm [resolvable:$true] %s121
      %s123 = sshll.u32 [#allocation12], 4
      %s124 = int_to_ptr.vmem [resolvable:$true] %s123
      %129 = dma.hbm_to_vmem [thread:$0]  %s122, 256, %s124, [#allocation13], 64, 64, 4
    $region65: #{tpu_custom_call.1} parent=1 // pred_fallthru
      _
    // Predicated region
    $region66: #{tpu_custom_call.1} parent=1 // pred_check
      _
    $region67: #{tpu_custom_call.1} parent=1 // pred_check_branch
      %131 = sbr.rel (0) target = $region69
    $region68: #{tpu_custom_call.1} parent=1 // pred_region
      _
    $region69: #{tpu_custom_call.1} parent=1 // pred_fallthru
      _
    // Predicated region
    $region70: #{tpu_custom_call.1} parent=1 // pred_check
      _
    $region71: #{tpu_custom_call.1} parent=1 // pred_check_branch
      %133 = sbr.rel (0) target = $region73
    $region72: #{tpu_custom_call.1} parent=1 // pred_region
      _
    $region73: #{tpu_custom_call.1} parent=1 // pred_fallthru
      _
    // Predicated region
    $region74: #{tpu_custom_call.1} parent=1 // pred_check
      _
    $region75: #{tpu_custom_call.1} parent=1 // pred_check_branch
      %135 = sbr.rel (0) target = $region77
    $region76: #{tpu_custom_call.1} parent=1 // pred_region
      _
    $region77: #{tpu_custom_call.1} parent=1 // pred_fallthru
      _
    // Predicated region
    $region78: #{tpu_custom_call.1} parent=1 // pred_check
      _
    $region79: #{tpu_custom_call.1} parent=1 // pred_check_branch
      %137 = sbr.rel (0) target = $region81
    $region80: #{tpu_custom_call.1} parent=1 // pred_region
      _
    $region81: #{tpu_custom_call.1} parent=1 // pred_fallthru
      _
    // Predicated region
    $region82: #{tpu_custom_call.1} parent=1 // pred_check
      _
    $region83: #{tpu_custom_call.1} parent=1 // pred_check_branch
      %139 = sbr.rel (0) target = $region85
    $region84: #{tpu_custom_call.1} parent=1 // pred_region
      _
    $region85: #{tpu_custom_call.1} parent=1 // pred_fallthru
      _
    // Predicated region
    $region86: #{tpu_custom_call.1} parent=1 // pred_check
      _
    $region87: #{tpu_custom_call.1} parent=1 // pred_check_branch
      %141 = sbr.rel (0) target = $region89
    $region88: #{tpu_custom_call.1} parent=1 // pred_region
      %143 = dma.done [#allocation4], 32
    $region89: #{tpu_custom_call.1} parent=1 // pred_fallthru
      _
    // Predicated region
    $region90: #{tpu_custom_call.1} parent=1 // pred_check
      _
    $region91: #{tpu_custom_call.1} parent=1 // pred_check_branch
      %145 = sbr.rel (0) target = $region93
    $region92: #{tpu_custom_call.1} parent=1 // pred_region
      %147 = dma.done [#allocation7], 16
    $region93: #{tpu_custom_call.1} parent=1 // pred_fallthru
      _
    // Predicated region
    $region94: #{tpu_custom_call.1} parent=1 // pred_check
      _
    $region95: #{tpu_custom_call.1} parent=1 // pred_check_branch
      %149 = sbr.rel (0) target = $region97
    $region96: #{tpu_custom_call.1} parent=1 // pred_region
      %151 = dma.done [#allocation7], 16
    $region97: #{tpu_custom_call.1} parent=1 // pred_fallthru
      _
    // Predicated region
    $region98: #{tpu_custom_call.1} parent=1 // pred_check
      _
    $region99: #{tpu_custom_call.1} parent=1 // pred_check_branch
      %153 = sbr.rel (0) target = $region101
    $region100: #{tpu_custom_call.1} parent=1 // pred_region
      %155 = dma.done [#allocation10], 16
    $region101: #{tpu_custom_call.1} parent=1 // pred_fallthru
      _
    // Predicated region
    $region102: #{tpu_custom_call.1} parent=1 // pred_check
      _
    $region103: #{tpu_custom_call.1} parent=1 // pred_check_branch
      %157 = sbr.rel (0) target = $region105
    $region104: #{tpu_custom_call.1} parent=1 // pred_region
      %159 = dma.done [#allocation10], 256
    $region105: #{tpu_custom_call.1} parent=1 // pred_fallthru
      _
    // Predicated region
    $region106: #{tpu_custom_call.1} parent=1 // pred_check
      _
    $region107: #{tpu_custom_call.1} parent=1 // pred_check_branch
      %161 = sbr.rel (0) target = $region109
    $region108: #{tpu_custom_call.1} parent=1 // pred_region
      %163 = dma.done [#allocation13], 256
    $region109: #{tpu_custom_call.1} parent=1 // pred_fallthru
      _
    %v165 = vld [vmem:[%s0] sm:$0xff]
    %v166 = vld [vmem:[%s0 + $0x8] sm:$0xff]
    %v167 = vld [vmem:[%s0 + $0x10] sm:$0xff]
    %v168 = vld [vmem:[%s0 + $0x18] sm:$0xff]
    %v169 = vpack.c.bf16 %v166, %v165
    %v170 = vpack.c.bf16 %v168, %v167
    %v171 = vld [vmem:[%s3] sm:$0xf]
    %v172 = vld [vmem:[%s3 + $0x4] sm:$0xf]
    %v173 = vld [vmem:[%s3 + $0x8] sm:$0xf]
    %v174 = vld [vmem:[%s3 + $0xc] sm:$0xf]
    %v175 = vld [vmem:[%s4] sm:$0x1]
    %v177 = vperm.slane %v175, 0
    %v183 = vunpack.c.l.b16 %v171
    %v184 = vunpack.c.l.b16 %v172
    %v185 = vunpack.c.l.b16 %v173
    %v186 = vunpack.c.l.b16 %v174
    %v187 = vpack.c.b16 %v184, %v183
    %v188 = vpack.c.b16 %v186, %v185
    %vm191 = vcmask 261120
    %v193 = vsel %vm191, %v169, 0
    %v196 = vsel %vm191, %v170, 0
    %198 = vmatpush.bf16.msra.mxu0 0
    %199 = vmatpush.bf16.msra.mxu0 0
    %200 = vmatpush.bf16.msra.mxu0 0
    %201 = vmatpush.bf16.msra.mxu0 0
    %202 = vmatpush.bf16.msra.mxu0 0
    %203 = vmatpush.bf16.msra.mxu0 0
    %204 = vmatpush.bf16.msra.mxu0 %v188
    %205 = vmatpush.bf16.msra.mxu0 %v187
    %206 = vmatmul.bf16.gmra.mxu0 %v193
    %v207 = vpop.f32.mrf.mxu0
    %v208 = vadd.f32 %v177, %v207
    %v209 = vpop.f32.mrf.mxu0
    %v210 = vadd.f32 %v177, %v209
    %211 = vmatmul.bf16.gmra.mxu0 %v196
    %v212 = vpop.f32.mrf.mxu0
    %v213 = vadd.f32 %v177, %v212
    %v214 = vpop.f32.mrf.mxu0
    %v215 = vadd.f32 %v177, %v214
    %216 = vdwg.mxu0
    %v217 = vpack.c.bf16 %v210, %v208
    %v218 = vpack.c.bf16 %v215, %v213
    %221 = vrot.lane.b32.xlu0 %v217, 96
    %v222 = vpop.permute.xlu0 %221
    %223 = vrot.lane.b32.xlu0 %v218, 96
    %v224 = vpop.permute.xlu0 %223
    %v226 = vsel %vm191, %v217, 0
    %v229 = vsel %vm191, %v218, 0
    %v232 = vsel %vm191, %v222, 0
    %v235 = vsel %vm191, %v224, 0
    %237 = vmatpush.bf16.xpose.msra.mxu0 0
    %238 = vmatpush.bf16.xpose.msra.mxu0 0
    %239 = vmatpush.bf16.xpose.msra.mxu0 0
    %240 = vmatpush.bf16.xpose.msra.mxu0 0
    %241 = vmatpush.bf16.xpose.msra.mxu0 0
    %242 = vmatpush.bf16.xpose.msra.mxu0 0
    %243 = vmatpush.bf16.xpose.msra.mxu0 %v235
    %244 = vmatpush.bf16.xpose.msra.mxu0 %v232
    %245 = vmatmul.bf16.gmra.mxu0 %v226
    %v246 = vpop.f32.mrf.mxu0
    %v247 = vadd.f32 0.0, %v246
    %v248 = vpop.f32.mrf.mxu0
    %v249 = vadd.f32 0.0, %v248
    %250 = vmatmul.bf16.gmra.mxu0 %v229
    %v251 = vpop.f32.mrf.mxu0
    %v252 = vadd.f32 0.0, %v251
    %v253 = vpop.f32.mrf.mxu0
    %v254 = vadd.f32 0.0, %v253
    %255 = vdwg.mxu0
    %v256 = vmul.f32 %v247, 0.17677669
    %v257 = vmul.f32 %v249, 0.17677669
    %v258 = vmul.f32 %v252, 0.17677669
    %v259 = vmul.f32 %v254, 0.17677669
    %v260 = vld [vmem:[%s1] sm:$0xff]
    %v261 = vld [vmem:[%s1 + $0x8] sm:$0xff]
    %v262 = vld [vmem:[%s1 + $0x10] sm:$0xff]
    %v263 = vld [vmem:[%s1 + $0x18] sm:$0xff]
    %v264 = vadd.f32 %v256, %v260
    %v265 = vadd.f32 %v257, %v261
    %v266 = vadd.f32 %v258, %v262
    %v267 = vadd.f32 %v259, %v263
    %v268 = vsel %vm191, %v264, -inf
    %269 = vmax.xlane.f32.xlu0 %v268
    %v270 = vpop.xlane.xlu0 %269
    %v271 = vsel %vm191, %v265, -inf
    %272 = vmax.xlane.f32.xlu0 %v271
    %v273 = vpop.xlane.xlu0 %272
    %v274 = vsel %vm191, %v266, -inf
    %275 = vmax.xlane.f32.xlu0 %v274
    %v276 = vpop.xlane.xlu0 %275
    %v277 = vsel %vm191, %v267, -inf
    %278 = vmax.xlane.f32.xlu0 %v277
    %v279 = vpop.xlane.xlu0 %278
    %v280 = vsub.f32 %v264, %v270
    %v281 = vsub.f32 %v265, %v273
    %v282 = vsub.f32 %v266, %v276
    %v283 = vsub.f32 %v267, %v279
    %v284 = vmul.f32 %v280, 1.442695
    %v285 = vpow.pop %v284
    %v286 = vmul.f32 %v281, 1.442695
    %v287 = vpow.pop %v286
    %v288 = vmul.f32 %v282, 1.442695
    %v289 = vpow.pop %v288
    %v290 = vmul.f32 %v283, 1.442695
    %v291 = vpow.pop %v290
    %v292 = vsel %vm191, %v285, 0.0
    %293 = vadd.xlane.f32.xlu0 %v292
    %v294 = vpop.xlane.xlu0 %293
    %v295 = vsel %vm191, %v287, 0.0
    %296 = vadd.xlane.f32.xlu0 %v295
    %v297 = vpop.xlane.xlu0 %296
    %v298 = vsel %vm191, %v289, 0.0
    %299 = vadd.xlane.f32.xlu0 %v298
    %v300 = vpop.xlane.xlu0 %299
    %v301 = vsel %vm191, %v291, 0.0
    %302 = vadd.xlane.f32.xlu0 %v301
    %v303 = vpop.xlane.xlu0 %302
    %v304 = vrcp.pop %v294
    %v305 = vmul.f32 %v294, %v304
    %v306 = vsub.f32 1.0, %v305
    %v307 = vmul.f32 %v304, %v306
    %v308 = vadd.f32 %v304, %v307
    %vm309 = vweird.f32 %v294
    %vm310 = vweird.f32 %v304
    %vm311 = vmor %vm309, %vm310
    %v312 = vsel %vm311, %v304, %v308
    %v313 = vand.u32 2147483647, %v294
    %vm314 = vcmp.eq.f32.partialorder %v313, 8.507059e+37
    %v315 = vand.u32 %v294, 2147483648
    %v316 = vor.u32 1.1754944e-38, %v315
    %v317 = vsel %vm314, %v316, %v312
    %v318 = vmul.f32 %v285, %v317
    %v319 = vrcp.pop %v297
    %v320 = vmul.f32 %v297, %v319
    %v321 = vsub.f32 1.0, %v320
    %v322 = vmul.f32 %v319, %v321
    %v323 = vadd.f32 %v319, %v322
    %vm324 = vweird.f32 %v297
    %vm325 = vweird.f32 %v319
    %vm326 = vmor %vm324, %vm325
    %v327 = vsel %vm326, %v319, %v323
    %v328 = vand.u32 2147483647, %v297
    %vm329 = vcmp.eq.f32.partialorder %v328, 8.507059e+37
    %v330 = vand.u32 %v297, 2147483648
    %v331 = vor.u32 1.1754944e-38, %v330
    %v332 = vsel %vm329, %v331, %v327
    %v333 = vmul.f32 %v287, %v332
    %v334 = vrcp.pop %v300
    %v335 = vmul.f32 %v300, %v334
    %v336 = vsub.f32 1.0, %v335
    %v337 = vmul.f32 %v334, %v336
    %v338 = vadd.f32 %v334, %v337
    %vm339 = vweird.f32 %v300
    %vm340 = vweird.f32 %v334
    %vm341 = vmor %vm339, %vm340
    %v342 = vsel %vm341, %v334, %v338
    %v343 = vand.u32 2147483647, %v300
    %vm344 = vcmp.eq.f32.partialorder %v343, 8.507059e+37
    %v345 = vand.u32 %v300, 2147483648
    %v346 = vor.u32 1.1754944e-38, %v345
    %v347 = vsel %vm344, %v346, %v342
    %v348 = vmul.f32 %v289, %v347
    %v349 = vrcp.pop %v303
    %v350 = vmul.f32 %v303, %v349
    %v351 = vsub.f32 1.0, %v350
    %v352 = vmul.f32 %v349, %v351
    %v353 = vadd.f32 %v349, %v352
    %vm354 = vweird.f32 %v303
    %vm355 = vweird.f32 %v349
    %vm356 = vmor %vm354, %vm355
    %v357 = vsel %vm356, %v349, %v353
    %v358 = vand.u32 2147483647, %v303
    %vm359 = vcmp.eq.f32.partialorder %v358, 8.507059e+37
    %v360 = vand.u32 %v303, 2147483648
    %v361 = vor.u32 1.1754944e-38, %v360
    %v362 = vsel %vm359, %v361, %v357
    %v363 = vmul.f32 %v291, %v362
    %v364 = vpack.c.bf16 %v333, %v318
    %v365 = vpack.c.bf16 %v363, %v348
    %366 = vrot.lane.b32.xlu0 %v217, 64
    %v367 = vpop.permute.xlu0 %366
    %368 = vrot.lane.b32.xlu0 %v218, 64
    %v369 = vpop.permute.xlu0 %368
    %v373 = vsel %vm191, %v364, 0
    %v376 = vsel %vm191, %v365, 0
    %378 = vmatpush.bf16.msra.mxu0 0
    %379 = vmatpush.bf16.msra.mxu0 0
    %380 = vmatpush.bf16.msra.mxu0 0
    %381 = vmatpush.bf16.msra.mxu0 0
    %382 = vmatpush.bf16.msra.mxu0 0
    %383 = vmatpush.bf16.msra.mxu0 0
    %384 = vmatpush.bf16.msra.mxu0 %v369
    %385 = vmatpush.bf16.msra.mxu0 %v367
    %386 = vmatmul.bf16.gmra.mxu0 %v373
    %v387 = vpop.f32.mrf.mxu0
    %v388 = vadd.f32 0.0, %v387
    %v389 = vpop.f32.mrf.mxu0
    %v390 = vadd.f32 0.0, %v389
    %391 = vmatmul.bf16.gmra.mxu0 %v376
    %v392 = vpop.f32.mrf.mxu0
    %v393 = vadd.f32 0.0, %v392
    %v394 = vpop.f32.mrf.mxu0
    %v395 = vadd.f32 0.0, %v394
    %396 = vdwg.mxu0
    %v397 = vpack.c.bf16 %v390, %v388
    %v398 = vpack.c.bf16 %v395, %v393
    %v399 = vld [vmem:[%s5] sm:$0xf]
    %v400 = vld [vmem:[%s5 + $0x4] sm:$0xf]
    %v401 = vld [vmem:[%s5 + $0x8] sm:$0xf]
    %v402 = vld [vmem:[%s5 + $0xc] sm:$0xf]
    %v403 = vld [vmem:[#allocation6] sm:$0x1]
    %v405 = vperm.slane %v403, 0
    %v411 = vunpack.c.l.b16 %v399
    %v412 = vunpack.c.l.b16 %v400
    %v413 = vunpack.c.l.b16 %v401
    %v414 = vunpack.c.l.b16 %v402
    %v415 = vpack.c.b16 %v412, %v411
    %v416 = vpack.c.b16 %v414, %v413
    %v420 = vsel %vm191, %v397, 0
    %v423 = vsel %vm191, %v398, 0
    %425 = vmatpush.bf16.msra.mxu0 0
    %426 = vmatpush.bf16.msra.mxu0 0
    %427 = vmatpush.bf16.msra.mxu0 0
    %428 = vmatpush.bf16.msra.mxu0 0
    %429 = vmatpush.bf16.msra.mxu0 0
    %430 = vmatpush.bf16.msra.mxu0 0
    %431 = vmatpush.bf16.msra.mxu0 %v416
    %432 = vmatpush.bf16.msra.mxu0 %v415
    %433 = vmatmul.bf16.gmra.mxu0 %v420
    %v434 = vpop.f32.mrf.mxu0
    %v435 = vadd.f32 %v405, %v434
    %v436 = vpop.f32.mrf.mxu0
    %v437 = vadd.f32 %v405, %v436
    %438 = vmatmul.bf16.gmra.mxu0 %v423
    %v439 = vpop.f32.mrf.mxu0
    %v440 = vadd.f32 %v405, %v439
    %v441 = vpop.f32.mrf.mxu0
    %v442 = vadd.f32 %v405, %v441
    %443 = vdwg.mxu0
    %v444 = vadd.f32 %v165, %v435
    %v445 = vadd.f32 %v166, %v437
    %v446 = vadd.f32 %v167, %v440
    %v447 = vadd.f32 %v168, %v442
    %v448 = vld [vmem:[#allocation8] sm:$0x1]
    %v449 = vld [vmem:[#allocation9] sm:$0x1]
    %v450 = vsel %vm191, %v444, 0.0
    %451 = vadd.xlane.f32.xlu0 %v450
    %v452 = vpop.xlane.xlu0 %451
    %v453 = vsel %vm191, %v445, 0.0
    %454 = vadd.xlane.f32.xlu0 %v453
    %v455 = vpop.xlane.xlu0 %454
    %v456 = vsel %vm191, %v446, 0.0
    %457 = vadd.xlane.f32.xlu0 %v456
    %v458 = vpop.xlane.xlu0 %457
    %v459 = vsel %vm191, %v447, 0.0
    %460 = vadd.xlane.f32.xlu0 %v459
    %v461 = vpop.xlane.xlu0 %460
    %v462 = vrcp.pop 32.0
    %v463 = vmul.f32 32.0, %v462
    %v464 = vsub.f32 1.0, %v463
    %v465 = vmul.f32 %v462, %v464
    %v466 = vadd.f32 %v462, %v465
    %vm467 = vweird.f32 %v462
    %v468 = vsel %vm467, %v462, %v466
    %v469 = vmul.f32 %v452, %v468
    %v470 = vmul.f32 %v455, %v468
    %v471 = vmul.f32 %v458, %v468
    %v472 = vmul.f32 %v461, %v468
    %v473 = vsub.f32 %v444, %v469
    %v474 = vsub.f32 %v445, %v470
    %v475 = vsub.f32 %v446, %v471
    %v476 = vsub.f32 %v447, %v472
    %v477 = vmul.f32 %v473, %v473
    %v478 = vmul.f32 %v474, %v474
    %v479 = vmul.f32 %v475, %v475
    %v480 = vmul.f32 %v476, %v476
    %v481 = vsel %vm191, %v477, 0.0
    %482 = vadd.xlane.f32.xlu0 %v481
    %v483 = vpop.xlane.xlu0 %482
    %v484 = vsel %vm191, %v478, 0.0
    %485 = vadd.xlane.f32.xlu0 %v484
    %v486 = vpop.xlane.xlu0 %485
    %v487 = vsel %vm191, %v479, 0.0
    %488 = vadd.xlane.f32.xlu0 %v487
    %v489 = vpop.xlane.xlu0 %488
    %v490 = vsel %vm191, %v480, 0.0
    %491 = vadd.xlane.f32.xlu0 %v490
    %v492 = vpop.xlane.xlu0 %491
    %v493 = vmul.f32 %v483, %v468
    %v494 = vmul.f32 %v486, %v468
    %v495 = vmul.f32 %v489, %v468
    %v496 = vmul.f32 %v492, %v468
    %v497 = vadd.f32 %v493, 1e-12
    %v498 = vadd.f32 %v494, 1e-12
    %v499 = vadd.f32 %v495, 1e-12
    %v500 = vadd.f32 %v496, 1e-12
    %v501 = vrsqrt.pop %v497
    %v502 = vmul.f32 %v501, %v497
    %v503 = vmul.f32 %v502, %v501
    %v504 = vmul.f32 0.5, %v503
    %v505 = vsub.f32 1.5, %v504
    %v506 = vmul.f32 %v501, %v505
    %vm507 = vweird.f32 %v497
    %vm508 = vweird.f32 %v501
    %vm509 = vmor %vm507, %vm508
    %v510 = vsel %vm509, %v501, %v506
    %v511 = vrsqrt.pop %v498
    %v512 = vmul.f32 %v511, %v498
    %v513 = vmul.f32 %v512, %v511
    %v514 = vmul.f32 0.5, %v513
    %v515 = vsub.f32 1.5, %v514
    %v516 = vmul.f32 %v511, %v515
    %vm517 = vweird.f32 %v498
    %vm518 = vweird.f32 %v511
    %vm519 = vmor %vm517, %vm518
    %v520 = vsel %vm519, %v511, %v516
    %v521 = vrsqrt.pop %v499
    %v522 = vmul.f32 %v521, %v499
    %v523 = vmul.f32 %v522, %v521
    %v524 = vmul.f32 0.5, %v523
    %v525 = vsub.f32 1.5, %v524
    %v526 = vmul.f32 %v521, %v525
    %vm527 = vweird.f32 %v499
    %vm528 = vweird.f32 %v521
    %vm529 = vmor %vm527, %vm528
    %v530 = vsel %vm529, %v521, %v526
    %v531 = vrsqrt.pop %v500
    %v532 = vmul.f32 %v531, %v500
    %v533 = vmul.f32 %v532, %v531
    %v534 = vmul.f32 0.5, %v533
    %v535 = vsub.f32 1.5, %v534
    %v536 = vmul.f32 %v531, %v535
    %vm537 = vweird.f32 %v500
    %vm538 = vweird.f32 %v531
    %vm539 = vmor %vm537, %vm538
    %v540 = vsel %vm539, %v531, %v536
    %v541 = vmul.f32 %v473, %v510
    %v542 = vmul.f32 %v474, %v520
    %v543 = vmul.f32 %v475, %v530
    %v544 = vmul.f32 %v476, %v540
    %v546 = vperm.slane %v448, 0
    %v548 = vmul.f32 %v541, %v546
    %v549 = vmul.f32 %v542, %v546
    %v550 = vmul.f32 %v543, %v546
    %v551 = vmul.f32 %v544, %v546
    %v553 = vperm.slane %v449, 0
    %v555 = vadd.f32 %v548, %v553
    %v556 = vadd.f32 %v549, %v553
    %v557 = vadd.f32 %v550, %v553
    %v558 = vadd.f32 %v551, %v553
    %v559 = vpack.c.bf16 %v556, %v555
    %v560 = vpack.c.bf16 %v558, %v557
    %v561 = vld [vmem:[#allocation11] sm:$0xf]
    %v562 = vld [vmem:[#allocation11 + $0x4] sm:$0xf]
    %v563 = vld [vmem:[#allocation11 + $0x8] sm:$0xf]
    %v564 = vld [vmem:[#allocation11 + $0xc] sm:$0xf]
    %v565 = vld [vmem:[%s10] sm:$0x1]
    %v567 = vperm.slane %v565, 0
    %v573 = vunpack.c.l.b16 %v561
    %v574 = vunpack.c.l.b16 %v562
    %v575 = vunpack.c.l.b16 %v563
    %v576 = vunpack.c.l.b16 %v564
    %v577 = vpack.c.b16 %v574, %v573
    %v578 = vpack.c.b16 %v576, %v575
    %v582 = vsel %vm191, %v559, 0
    %v585 = vsel %vm191, %v560, 0
    %587 = vmatpush.bf16.msra.mxu0 0
    %588 = vmatpush.bf16.msra.mxu0 0
    %589 = vmatpush.bf16.msra.mxu0 0
    %590 = vmatpush.bf16.msra.mxu0 0
    %591 = vmatpush.bf16.msra.mxu0 0
    %592 = vmatpush.bf16.msra.mxu0 0
    %593 = vmatpush.bf16.msra.mxu0 %v578
    %594 = vmatpush.bf16.msra.mxu0 %v577
    %595 = vmatmul.bf16.gmra.mxu0 %v582
    %v596 = vpop.f32.mrf.mxu0
    %v597 = vadd.f32 %v567, %v596
    %v598 = vpop.f32.mrf.mxu0
    %v599 = vadd.f32 %v567, %v598
    %600 = vmatmul.bf16.gmra.mxu0 %v585
    %v601 = vpop.f32.mrf.mxu0
    %v602 = vadd.f32 %v567, %v601
    %v603 = vpop.f32.mrf.mxu0
    %v604 = vadd.f32 %v567, %v603
    %605 = vdwg.mxu0
    %v606 = vmul.f32 %v597, %v597
    %v607 = vmul.f32 %v599, %v599
    %v608 = vmul.f32 %v602, %v602
    %v609 = vmul.f32 %v604, %v604
    %v610 = vmul.f32 %v597, %v606
    %v611 = vmul.f32 %v599, %v607
    %v612 = vmul.f32 %v602, %v608
    %v613 = vmul.f32 %v604, %v609
    %v614 = vmul.f32 %v610, 0.044715
    %v615 = vmul.f32 %v611, 0.044715
    %v616 = vmul.f32 %v612, 0.044715
    %v617 = vmul.f32 %v613, 0.044715
    %v618 = vadd.f32 %v597, %v614
    %v619 = vadd.f32 %v599, %v615
    %v620 = vadd.f32 %v602, %v616
    %v621 = vadd.f32 %v604, %v617
    %v622 = vmul.f32 %v618, 0.7978846
    %v623 = vmul.f32 %v619, 0.7978846
    %v624 = vmul.f32 %v620, 0.7978846
    %v625 = vmul.f32 %v621, 0.7978846
    %v626 = vtanh.pop %v622
    %v627 = vtanh.pop %v623
    %v628 = vtanh.pop %v624
    %v629 = vtanh.pop %v625
    %v630 = vadd.f32 %v626, 1.0
    %v631 = vadd.f32 %v627, 1.0
    %v632 = vadd.f32 %v628, 1.0
    %v633 = vadd.f32 %v629, 1.0
    %v634 = vmul.f32 %v630, 0.5
    %v635 = vmul.f32 %v631, 0.5
    %v636 = vmul.f32 %v632, 0.5
    %v637 = vmul.f32 %v633, 0.5
    %v638 = vmul.f32 %v597, %v634
    %v639 = vmul.f32 %v599, %v635
    %v640 = vmul.f32 %v602, %v636
    %v641 = vmul.f32 %v604, %v637
    %v642 = vpack.c.bf16 %v639, %v638
    %v643 = vpack.c.bf16 %v641, %v640
    %v644 = vld [vmem:[%s11] sm:$0xf]
    %v645 = vld [vmem:[%s11 + $0x4] sm:$0xf]
    %v646 = vld [vmem:[%s11 + $0x8] sm:$0xf]
    %v647 = vld [vmem:[%s11 + $0xc] sm:$0xf]
    %v648 = vld [vmem:[%s11 + $0x10] sm:$0xf]
    %v649 = vld [vmem:[%s11 + $0x14] sm:$0xf]
    %v650 = vld [vmem:[%s11 + $0x18] sm:$0xf]
    %v651 = vld [vmem:[%s11 + $0x1c] sm:$0xf]
    %v652 = vld [vmem:[%s11 + $0x20] sm:$0xf]
    %v653 = vld [vmem:[%s11 + $0x24] sm:$0xf]
    %v654 = vld [vmem:[%s11 + $0x28] sm:$0xf]
    %v655 = vld [vmem:[%s11 + $0x2c] sm:$0xf]
    %v656 = vld [vmem:[%s11 + $0x30] sm:$0xf]
    %v657 = vld [vmem:[%s11 + $0x34] sm:$0xf]
    %v658 = vld [vmem:[%s11 + $0x38] sm:$0xf]
    %v659 = vld [vmem:[%s11 + $0x3c] sm:$0xf]
    %v660 = vld [vmem:[%s12] sm:$0x1]
    %v662 = vperm.slane %v660, 0
    %v680 = vunpack.c.l.b16 %v644
    %v681 = vunpack.c.l.b16 %v645
    %v682 = vunpack.c.l.b16 %v646
    %v683 = vunpack.c.l.b16 %v647
    %v684 = vunpack.c.l.b16 %v648
    %v685 = vunpack.c.l.b16 %v649
    %v686 = vunpack.c.l.b16 %v650
    %v687 = vunpack.c.l.b16 %v651
    %v688 = vunpack.c.l.b16 %v652
    %v689 = vunpack.c.l.b16 %v653
    %v690 = vunpack.c.l.b16 %v654
    %v691 = vunpack.c.l.b16 %v655
    %v692 = vunpack.c.l.b16 %v656
    %v693 = vunpack.c.l.b16 %v657
    %v694 = vunpack.c.l.b16 %v658
    %v695 = vunpack.c.l.b16 %v659
    %v696 = vpack.c.b16 %v681, %v680
    %v697 = vpack.c.b16 %v683, %v682
    %v698 = vpack.c.b16 %v685, %v684
    %v699 = vpack.c.b16 %v687, %v686
    %v700 = vpack.c.b16 %v689, %v688
    %v701 = vpack.c.b16 %v691, %v690
    %v702 = vpack.c.b16 %v693, %v692
    %v703 = vpack.c.b16 %v695, %v694
    %712 = vmatpush.bf16.msra.mxu0 %v703
    %713 = vmatpush.bf16.msra.mxu0 %v702
    %714 = vmatpush.bf16.msra.mxu0 %v701
    %715 = vmatpush.bf16.msra.mxu0 %v700
    %716 = vmatpush.bf16.msra.mxu0 %v699
    %717 = vmatpush.bf16.msra.mxu0 %v698
    %718 = vmatpush.bf16.msra.mxu0 %v697
    %719 = vmatpush.bf16.msra.mxu0 %v696
    %720 = vmatmul.bf16.gmra.mxu0 %v642
    %v721 = vpop.f32.mrf.mxu0
    %v722 = vadd.f32 %v662, %v721
    %v723 = vpop.f32.mrf.mxu0
    %v724 = vadd.f32 %v662, %v723
    %725 = vmatmul.bf16.gmra.mxu0 %v643
    %v726 = vpop.f32.mrf.mxu0
    %v727 = vadd.f32 %v662, %v726
    %v728 = vpop.f32.mrf.mxu0
    %v729 = vadd.f32 %v662, %v728
    %730 = vdwg.mxu0
    %v731 = vadd.f32 %v555, %v722
    %v732 = vadd.f32 %v556, %v724
    %v733 = vadd.f32 %v557, %v727
    %v734 = vadd.f32 %v558, %v729
    %v735 = vld [vmem:[%s13] sm:$0x1]
    %v736 = vld [vmem:[%s14] sm:$0x1]
    %v737 = vsel %vm191, %v731, 0.0
    %738 = vadd.xlane.f32.xlu0 %v737
    %v739 = vpop.xlane.xlu0 %738
    %v740 = vsel %vm191, %v732, 0.0
    %741 = vadd.xlane.f32.xlu0 %v740
    %v742 = vpop.xlane.xlu0 %741
    %v743 = vsel %vm191, %v733, 0.0
    %744 = vadd.xlane.f32.xlu0 %v743
    %v745 = vpop.xlane.xlu0 %744
    %v746 = vsel %vm191, %v734, 0.0
    %747 = vadd.xlane.f32.xlu0 %v746
    %v748 = vpop.xlane.xlu0 %747
    %v749 = vmul.f32 %v739, %v468
    %v750 = vmul.f32 %v742, %v468
    %v751 = vmul.f32 %v745, %v468
    %v752 = vmul.f32 %v748, %v468
    %v753 = vsub.f32 %v731, %v749
    %v754 = vsub.f32 %v732, %v750
    %v755 = vsub.f32 %v733, %v751
    %v756 = vsub.f32 %v734, %v752
    %v757 = vmul.f32 %v753, %v753
    %v758 = vmul.f32 %v754, %v754
    %v759 = vmul.f32 %v755, %v755
    %v760 = vmul.f32 %v756, %v756
    %v761 = vsel %vm191, %v757, 0.0
    %762 = vadd.xlane.f32.xlu0 %v761
    %v763 = vpop.xlane.xlu0 %762
    %v764 = vsel %vm191, %v758, 0.0
    %765 = vadd.xlane.f32.xlu0 %v764
    %v766 = vpop.xlane.xlu0 %765
    %v767 = vsel %vm191, %v759, 0.0
    %768 = vadd.xlane.f32.xlu0 %v767
    %v769 = vpop.xlane.xlu0 %768
    %v770 = vsel %vm191, %v760, 0.0
    %771 = vadd.xlane.f32.xlu0 %v770
    %v772 = vpop.xlane.xlu0 %771
    %v773 = vmul.f32 %v763, %v468
    %v774 = vmul.f32 %v766, %v468
    %v775 = vmul.f32 %v769, %v468
    %v776 = vmul.f32 %v772, %v468
    %v777 = vadd.f32 %v773, 1e-12
    %v778 = vadd.f32 %v774, 1e-12
    %v779 = vadd.f32 %v775, 1e-12
    %v780 = vadd.f32 %v776, 1e-12
    %v781 = vrsqrt.pop %v777
    %v782 = vmul.f32 %v781, %v777
    %v783 = vmul.f32 %v782, %v781
    %v784 = vmul.f32 0.5, %v783
    %v785 = vsub.f32 1.5, %v784
    %v786 = vmul.f32 %v781, %v785
    %vm787 = vweird.f32 %v777
    %vm788 = vweird.f32 %v781
    %vm789 = vmor %vm787, %vm788
    %v790 = vsel %vm789, %v781, %v786
    %v791 = vrsqrt.pop %v778
    %v792 = vmul.f32 %v791, %v778
    %v793 = vmul.f32 %v792, %v791
    %v794 = vmul.f32 0.5, %v793
    %v795 = vsub.f32 1.5, %v794
    %v796 = vmul.f32 %v791, %v795
    %vm797 = vweird.f32 %v778
    %vm798 = vweird.f32 %v791
    %vm799 = vmor %vm797, %vm798
    %v800 = vsel %vm799, %v791, %v796
    %v801 = vrsqrt.pop %v779
    %v802 = vmul.f32 %v801, %v779
    %v803 = vmul.f32 %v802, %v801
    %v804 = vmul.f32 0.5, %v803
    %v805 = vsub.f32 1.5, %v804
    %v806 = vmul.f32 %v801, %v805
    %vm807 = vweird.f32 %v779
    %vm808 = vweird.f32 %v801
    %vm809 = vmor %vm807, %vm808
    %v810 = vsel %vm809, %v801, %v806
    %v811 = vrsqrt.pop %v780
    %v812 = vmul.f32 %v811, %v780
    %v813 = vmul.f32 %v812, %v811
    %v814 = vmul.f32 0.5, %v813
    %v815 = vsub.f32 1.5, %v814
    %v816 = vmul.f32 %v811, %v815
    %vm817 = vweird.f32 %v780
    %vm818 = vweird.f32 %v811
    %vm819 = vmor %vm817, %vm818
    %v820 = vsel %vm819, %v811, %v816
    %v821 = vmul.f32 %v753, %v790
    %v822 = vmul.f32 %v754, %v800
    %v823 = vmul.f32 %v755, %v810
    %v824 = vmul.f32 %v756, %v820
    %v826 = vperm.slane %v735, 0
    %v828 = vmul.f32 %v821, %v826
    %v829 = vmul.f32 %v822, %v826
    %v830 = vmul.f32 %v823, %v826
    %v831 = vmul.f32 %v824, %v826
    %v833 = vperm.slane %v736, 0
    %v835 = vadd.f32 %v828, %v833
    %v836 = vadd.f32 %v829, %v833
    %v837 = vadd.f32 %v830, %v833
    %v838 = vadd.f32 %v831, %v833
    %839 = vst.msk [vmem:[#allocation14] sm:$0xff] %vm191, %v835
    %840 = vst.msk [vmem:[#allocation14 + $0x8] sm:$0xff] %vm191, %v836
    %841 = vst.msk [vmem:[#allocation14 + $0x10] sm:$0xff] %vm191, %v837
    %842 = vst.msk [vmem:[#allocation14 + $0x18] sm:$0xff] %vm191, %v838
    %v843 = vld [vmem:[#allocation3] sm:$0x3]
    %v845 = vsel %vm191, %v843, 0
    %847 = vmatpush.msra.mxu0 0.0
    %848 = vmatpush.msra.mxu0 0.0
    %849 = vmatpush.msra.mxu0 0.0
    %850 = vmatpush.msra.mxu0 0.0
    %851 = vmatpush.msra.mxu0 0.0
    %852 = vmatpush.msra.mxu0 0.0
    %853 = vmatpush.msra.mxu0 0.0
    %854 = vmatpush.msra.mxu0 0.0
    %855 = vmatpush.msra.mxu0 0.0
    %856 = vmatpush.msra.mxu0 0.0
    %857 = vmatpush.msra.mxu0 0.0
    %858 = vmatpush.msra.mxu0 0.0
    %859 = vmatpush.msra.mxu0 %v838
    %860 = vmatpush.msra.mxu0 %v837
    %861 = vmatpush.msra.mxu0 %v836
    %862 = vmatpush.msra.mxu0 %v835
    %863 = vmatmul.f32.gmra.mxu0 %v845
    %v864 = vpop.f32.mrf.mxu0
    %v865 = vadd.f32 0.0, %v864
    %866 = vdwg.mxu0
    %vm867 = vcmask 254976
    %868 = vst.msk [vmem:[#allocation15] sm:$0x3] %vm867, %v865
    %v869 = vpack.c.bf16 %v865, %v865
    %v870 = vld [vmem:[#allocation12] sm:$0xf]
    %v871 = vld [vmem:[#allocation12 + $0x4] sm:$0xf]
    %v872 = vld [vmem:[#allocation12 + $0x8] sm:$0xf]
    %v873 = vld [vmem:[#allocation12 + $0xc] sm:$0xf]
    %v874 = vld [vmem:[%s16] sm:$0x1]
    %v876 = vperm.slane %v874, 0
    %v882 = vunpack.c.l.b16 %v870
    %v883 = vunpack.c.l.b16 %v871
    %v884 = vunpack.c.l.b16 %v872
    %v885 = vunpack.c.l.b16 %v873
    %v886 = vpack.c.b16 %v883, %v882
    %v887 = vpack.c.b16 %v885, %v884
    %v891 = vsel %vm191, %v869, 0
    %893 = vmatpush.bf16.msra.mxu0 0
    %894 = vmatpush.bf16.msra.mxu0 0
    %895 = vmatpush.bf16.msra.mxu0 0
    %896 = vmatpush.bf16.msra.mxu0 0
    %897 = vmatpush.bf16.msra.mxu0 0
    %898 = vmatpush.bf16.msra.mxu0 0
    %899 = vmatpush.bf16.msra.mxu0 %v887
    %900 = vmatpush.bf16.msra.mxu0 %v886
    %901 = vmatmul.bf16.gmra.mxu0 %v891
    %v902 = vpop.f32.mrf.mxu0
    %v903 = vadd.f32 %v876, %v902
    %v904 = vpop.f32.mrf.mxu0
    %905 = vdwg.mxu0
    %v906 = vtanh.pop %v903
    %907 = vst.msk [vmem:[#allocation17] sm:$0x3] %vm867, %v906
    %v908 = vld [vmem:[%s20] sm:$0x3f]
    %v909 = vld [vmem:[%s17] sm:$0xf]
    %v910 = vld [vmem:[%s17 + $0x4] sm:$0xf]
    %v911 = vld [vmem:[%s17 + $0x8] sm:$0xf]
    %v912 = vld [vmem:[%s17 + $0xc] sm:$0xf]
    %v913 = vpack.c.bf16 %v908, %v908
    %v918 = vunpack.c.l.b16 %v909
    %v919 = vunpack.c.l.b16 %v910
    %v920 = vunpack.c.l.b16 %v911
    %v921 = vunpack.c.l.b16 %v912
    %v922 = vpack.c.b16 %v919, %v918
    %v923 = vpack.c.b16 %v921, %v920
    %926 = vxpose.xlu0.c.b16.start [1/8] %v922, 128
    %927 = vxpose.xlu0.c.b16.cont [2/8] %v923, 128
    %928 = vxpose.xlu0.c.b16.cont [3/8] 0, 128
    %929 = vxpose.xlu0.c.b16.cont [4/8] 0, 128
    %930 = vxpose.xlu0.c.b16.cont [5/8] 0, 128
    %931 = vxpose.xlu0.c.b16.cont [6/8] 0, 128
    %932 = vxpose.xlu0.c.b16.cont [7/8] 0, 128
    %933 = vxpose.xlu0.c.b16.end [8/8] 0, 128
    %v934 = vpop.trf.xlu0
    %v935 = vpop.trf.xlu0
    %v936 = vpop.trf.xlu0
    %v937 = vpop.trf.xlu0
    %v938 = vpop.trf.xlu0
    %v939 = vpop.trf.xlu0
    %v940 = vpop.trf.xlu0
    %v941 = vpop.trf.xlu0
    %v943 = vsel %vm191, %v934, 0
    %v946 = vsel %vm191, %v913, 0
    %948 = vmatpush.bf16.xpose.msra.mxu0 0
    %949 = vmatpush.bf16.xpose.msra.mxu0 0
    %950 = vmatpush.bf16.xpose.msra.mxu0 0
    %951 = vmatpush.bf16.xpose.msra.mxu0 0
    %952 = vmatpush.bf16.xpose.msra.mxu0 0
    %953 = vmatpush.bf16.xpose.msra.mxu0 0
    %954 = vmatpush.bf16.xpose.msra.mxu0 0
    %955 = vmatpush.bf16.xpose.msra.mxu0 %v946
    %956 = vmatmul.bf16.gmra.mxu0 %v943
    %v957 = vpop.f32.mrf.mxu0
    %v958 = vadd.f32 0.0, %v957
    %v959 = vpop.f32.mrf.mxu0
    %960 = vdwg.mxu0
    %v961 = vld [vmem:[%s18] sm:$0xf]
    %v962 = vld [vmem:[%s18 + $0x4] sm:$0xf]
    %v963 = vld [vmem:[%s18 + $0x8] sm:$0xf]
    %v964 = vld [vmem:[%s18 + $0xc] sm:$0xf]
    %v969 = vunpack.c.l.b16 %v961
    %v970 = vunpack.c.l.b16 %v962
    %v971 = vunpack.c.l.b16 %v963
    %v972 = vunpack.c.l.b16 %v964
    %v973 = vpack.c.b16 %v970, %v969
    %v974 = vpack.c.b16 %v972, %v971
    %977 = vmatpush.bf16.msra.mxu0 0
    %978 = vmatpush.bf16.msra.mxu0 0
    %979 = vmatpush.bf16.msra.mxu0 0
    %980 = vmatpush.bf16.msra.mxu0 0
    %981 = vmatpush.bf16.msra.mxu0 0
    %982 = vmatpush.bf16.msra.mxu0 0
    %983 = vmatpush.bf16.msra.mxu0 %v974
    %984 = vmatpush.bf16.msra.mxu0 %v973
    %985 = vmatmul.bf16.gmra.mxu0 %v891
    %v986 = vpop.f32.mrf.mxu0
    %v987 = vadd.f32 0.0, %v986
    %v988 = vpop.f32.mrf.mxu0
    %989 = vdwg.mxu0
    %991 = vset.pattern.permute.xlu0 0
    %992 = vperm.xlu0 %991, %v987
    %v993 = vpop.permute.xlu0 %992
    %v995 = vperm.slane %v958, 0
    %v996 = vadd.f32 %v993, %v995
    %v997 = vld [vmem:[#allocation2] sm:$0x1]
    %v999 = vperm.slane %v997, 0
    %1000 = vset.pattern.permute.xlu0 0
    %1001 = vperm.xlu0 %1000, %v999
    %v1002 = vpop.permute.xlu0 %1001
    %v1004 = vadd.f32 %v996, %v1002
    %v1005 = vxor.u32 %v1004, 2147483648
    %v1006 = vmul.f32 %v1005, 1.442695
    %v1007 = vpow.pop %v1006
    %v1008 = vadd.f32 %v1007, 1.0
    %v1009 = vrcp.pop %v1008
    %v1010 = vmul.f32 %v1008, %v1009
    %v1011 = vsub.f32 1.0, %v1010
    %v1012 = vmul.f32 %v1009, %v1011
    %v1013 = vadd.f32 %v1009, %v1012
    %vm1014 = vweird.f32 %v1008
    %vm1015 = vweird.f32 %v1009
    %vm1016 = vmor %vm1014, %vm1015
    %v1017 = vsel %vm1016, %v1009, %v1013
    %v1018 = vand.u32 2147483647, %v1008
    %vm1019 = vcmp.eq.f32.partialorder %v1018, 8.507059e+37
    %v1020 = vand.u32 %v1008, 2147483648
    %v1021 = vor.u32 1.1754944e-38, %v1020
    %v1022 = vsel %vm1019, %v1021, %v1017
    %v1023 = vmul.f32 1.0, %v1022
    %vm1024 = vcmask 41984
    %1025 = vst.msk [vmem:[#allocation18] sm:$0x3] %vm1024, %v1023
    %v1026 = vsel %vm1024, %v1023, -inf
    %1027 = vmax.xlane.f32.xlu0 %v1026
    %v1028 = vpop.xlane.xlu0 %1027
    %v1029 = vsub.f32 %v1023, %v1028
    %v1030 = vmul.f32 %v1029, 1.442695
    %v1031 = vpow.pop %v1030
    %v1032 = vsel %vm1024, %v1031, 0.0
    %1033 = vadd.xlane.f32.xlu0 %v1032
    %v1034 = vpop.xlane.xlu0 %1033
    %v1035 = vrcp.pop %v1034
    %v1036 = vmul.f32 %v1034, %v1035
    %v1037 = vsub.f32 1.0, %v1036
    %v1038 = vmul.f32 %v1035, %v1037
    %v1039 = vadd.f32 %v1035, %v1038
    %vm1040 = vweird.f32 %v1034
    %vm1041 = vweird.f32 %v1035
    %vm1042 = vmor %vm1040, %vm1041
    %v1043 = vsel %vm1042, %v1035, %v1039
    %v1044 = vand.u32 2147483647, %v1034
    %vm1045 = vcmp.eq.f32.partialorder %v1044, 8.507059e+37
    %v1046 = vand.u32 %v1034, 2147483648
    %v1047 = vor.u32 1.1754944e-38, %v1046
    %v1048 = vsel %vm1045, %v1047, %v1043
    %v1049 = vmul.f32 %v1031, %v1048
    %1050 = vst.msk [vmem:[#allocation20] sm:$0x3] %vm1024, %v1049
    // Predicated region
    $region110: #{tpu_custom_call.1} parent=1 // pred_check
      _
    $region111: #{tpu_custom_call.1} parent=1 // pred_check_branch
      %1052 = sbr.rel (0) target = $region113
    $region112: #{tpu_custom_call.1} parent=1 // pred_region
      %1054 = vsyncadd [#allocation5], 0
      %s1055 = sshll.u32 [#allocation14], 4
      %s1056 = int_to_ptr.vmem [resolvable:$true] %s1055
      %s1057 = sshll.u32 %s21, 4
      %s1058 = int_to_ptr.hbm [resolvable:$true] %s1057
      %1063 = dma.vmem_to_hbm [thread:$0]  %s1056, 512, %s1058, [#allocation5], 128, 128, 8
    $region113: #{tpu_custom_call.1} parent=1 // pred_fallthru
      _
    // Predicated region
    $region114: #{tpu_custom_call.1} parent=1 // pred_check
      _
    $region115: #{tpu_custom_call.1} parent=1 // pred_check_branch
      %1065 = sbr.rel (0) target = $region117
    $region116: #{tpu_custom_call.1} parent=1 // pred_region
      %1067 = vsyncadd [#allocation16], 0
      %s1069 = sshll.u32 [#allocation15], 4
      %s1070 = int_to_ptr.vmem [resolvable:$true] %s1069
      %s1071 = sshll.u32 %s22, 4
      %s1072 = int_to_ptr.hbm [resolvable:$true] %s1071
      %1074 = dma.vmem_to_hbm [thread:$0]  %s1070, 32, %s1072, [#allocation16]
    $region117: #{tpu_custom_call.1} parent=1 // pred_fallthru
      _
    // Predicated region
    $region118: #{tpu_custom_call.1} parent=1 // pred_check
      _
    $region119: #{tpu_custom_call.1} parent=1 // pred_check_branch
      %1076 = sbr.rel (0) target = $region121
    $region120: #{tpu_custom_call.1} parent=1 // pred_region
      %1078 = vsyncadd [#allocation16], 0
      %s1080 = sshll.u32 [#allocation17], 4
      %s1081 = int_to_ptr.vmem [resolvable:$true] %s1080
      %s1082 = sshll.u32 %s23, 4
      %s1083 = int_to_ptr.hbm [resolvable:$true] %s1082
      %1085 = dma.vmem_to_hbm [thread:$0]  %s1081, 32, %s1083, [#allocation16]
    $region121: #{tpu_custom_call.1} parent=1 // pred_fallthru
      _
    // Predicated region
    $region122: #{tpu_custom_call.1} parent=1 // pred_check
      _
    $region123: #{tpu_custom_call.1} parent=1 // pred_check_branch
      %1087 = sbr.rel (0) target = $region125
    $region124: #{tpu_custom_call.1} parent=1 // pred_region
      %1089 = vsyncadd [#allocation19], 0
      %s1091 = sshll.u32 [#allocation18], 4
      %s1092 = int_to_ptr.vmem [resolvable:$true] %s1091
      %s1093 = sshll.u32 %s24, 4
      %s1094 = int_to_ptr.hbm [resolvable:$true] %s1093
      %1096 = dma.vmem_to_hbm [thread:$0]  %s1092, 32, %s1094, [#allocation19]
    $region125: #{tpu_custom_call.1} parent=1 // pred_fallthru
      _
    // Predicated region
    $region126: #{tpu_custom_call.1} parent=1 // pred_check
      _
    $region127: #{tpu_custom_call.1} parent=1 // pred_check_branch
      %1098 = sbr.rel (0) target = $region129
    $region128: #{tpu_custom_call.1} parent=1 // pred_region
      %1100 = vsyncadd [#allocation19], 0
      %s1102 = sshll.u32 [#allocation20], 4
      %s1103 = int_to_ptr.vmem [resolvable:$true] %s1102
      %s1104 = sshll.u32 %s25, 4
      %s1105 = int_to_ptr.hbm [resolvable:$true] %s1104
      %1107 = dma.vmem_to_hbm [thread:$0]  %s1103, 32, %s1105, [#allocation19]
    $region129: #{tpu_custom_call.1} parent=1 // pred_fallthru
      _
    // Predicated region
    $region130: #{tpu_custom_call.1} parent=1 // pred_check
      _
    $region131: #{tpu_custom_call.1} parent=1 // pred_check_branch
      %1109 = sbr.rel (0) target = $region133
    $region132: #{tpu_custom_call.1} parent=1 // pred_region
      %1111 = dma.done [#allocation5], 512
    $region133: #{tpu_custom_call.1} parent=1 // pred_fallthru
      _
    // Predicated region
    $region134: #{tpu_custom_call.1} parent=1 // pred_check
      _
    $region135: #{tpu_custom_call.1} parent=1 // pred_check_branch
      %1113 = sbr.rel (0) target = $region137
    $region136: #{tpu_custom_call.1} parent=1 // pred_region
      %1115 = dma.done [#allocation16], 32
    $region137: #{tpu_custom_call.1} parent=1 // pred_fallthru
      _
    // Predicated region
    $region138: #{tpu_custom_call.1} parent=1 // pred_check
      _
    $region139: #{tpu_custom_call.1} parent=1 // pred_check_branch
      %1117 = sbr.rel (0) target = $region141
    $region140: #{tpu_custom_call.1} parent=1 // pred_region
      %1119 = dma.done [#allocation16], 32
    $region141: #{tpu_custom_call.1} parent=1 // pred_fallthru
      _
    // Predicated region
    $region142: #{tpu_custom_call.1} parent=1 // pred_check
      _
    $region143: #{tpu_custom_call.1} parent=1 // pred_check_branch
      %1121 = sbr.rel (0) target = $region145
    $region144: #{tpu_custom_call.1} parent=1 // pred_region
      %1123 = dma.done [#allocation19], 32
    $region145: #{tpu_custom_call.1} parent=1 // pred_fallthru
      _
    // Predicated region
    $region146: #{tpu_custom_call.1} parent=1 // pred_check
      _
    $region147: #{tpu_custom_call.1} parent=1 // pred_check_branch
      %1125 = sbr.rel (0) target = $region149
    $region148: #{tpu_custom_call.1} parent=1 // pred_region
      %1127 = dma.done [#allocation19], 32
    $region149: #{tpu_custom_call.1} parent=1 // pred_fallthru
      _
    %1128 = vsyncpa [#allocation4], 1
    %1129 = vsyncpa [#allocation7], 1
    %1130 = vsyncpa [#allocation10], 1
    %1131 = vsyncpa [#allocation13], 1
    %1132 = vsyncpa [#allocation5], 1
    %1133 = vsyncpa [#allocation16], 1
    %1134 = vsyncpa [#allocation19], 1

</llo_original>
